<compile_context>
chip_gen: v7x
topology: tpu7x:2x2x1
jax: 0.10.0
libtpu: 0.0.40
codegen_flags: <defaults>
</compile_context>

<pallas_src>
import math

import jax
import jax.numpy as jnp
from jax.experimental import pallas as pl
from jax.experimental.pallas import tpu as pltpu

INPUT_DTYPE = jnp.bfloat16   # analog of torch.float16
OUTPUT_DTYPE = jnp.float32   # torch.float32


def _mini_unet_kernel(temb_ref, x_ref, ehs_ref,
                      wt_ref, bt_ref,
                      win_ref, bin_ref,
                      wq_ref, wk_ref, wv_ref, wo_ref,
                      wout_ref, bout_ref,
                      out_ref):
    f32 = jnp.float32
    bf16 = x_ref.dtype                      # INPUT_DTYPE
    B = x_ref.shape[0]
    scale = 1.0 / math.sqrt(wq_ref.shape[0])   # wq_T is [Dh, Chid]

    # --- batched timestep-embedding MLP + SiLU (bf16 MXU, f32 accumulate) ---
    t = jnp.dot(wt_ref[...], temb_ref[...], preferred_element_type=f32)     # [Chid, B]
    t = t + bt_ref[...].astype(f32)
    t = t * pl.reciprocal(1.0 + jnp.exp(-t), approx=True)                   # SiLU (EUP)

    bin_f32 = bin_ref[...].astype(f32)      # [Chid, 1]
    bout_f32 = bout_ref[...].astype(f32)    # [C, 1]

    # Static unroll over batch (grid was collapsed; B is tiny and compile-time).
    for b in range(B):
        x_b = x_ref[b]                      # [C, HW]  bf16, lane-dense
        ehs_b = ehs_ref[b]                  # [S, D]   bf16

        # conv_in (1x1 channel mix) with folded (bias + time-emb) broadcast add
        bias_b = bin_f32 + t[:, b:b + 1]                                     # [Chid, 1]
        h = jnp.dot(win_ref[...], x_b, preferred_element_type=f32) + bias_b  # [Chid, HW]
        h_bf = h.astype(bf16)               # half-precision activation

        # cross-attention against encoder_hidden_states (lane-dense [*, HW])
        q = jnp.dot(wq_ref[...], h_bf, preferred_element_type=f32)           # [Dh, HW]
        k = jnp.dot(ehs_b, wk_ref[...], preferred_element_type=f32)          # [S, Dh]
        v = jnp.dot(ehs_b, wv_ref[...], preferred_element_type=f32)          # [S, Dh]

        s = jnp.dot(k.astype(bf16), q.astype(bf16),
                    preferred_element_type=f32) * scale                      # [S, HW]
        s = s - jnp.max(s, axis=0, keepdims=True)                            # sublane reduce
        p = jnp.exp(s)
        p = p * pl.reciprocal(jnp.sum(p, axis=0, keepdims=True), approx=True)

        # attn = v^T @ p  -> [Dh, HW]  (contraction over S on both operands)
        attn = jax.lax.dot_general(
            v.astype(bf16), p.astype(bf16),
            dimension_numbers=(((0,), (0,)), ((), ())),
            preferred_element_type=f32)
        h = h + jnp.dot(wo_ref[...], attn.astype(bf16),
                        preferred_element_type=f32)                          # residual, f32

        # conv_out back to C channels; this store realises `.to(output_dtype)`
        out = jnp.dot(wout_ref[...], h.astype(bf16),
                      preferred_element_type=f32) + bout_f32                 # [C, HW]
        out_ref[b] = out.astype(out_ref.dtype)


def init_params(key, c, c_hid, d_cross, d_head, f_emb):
    """Weights stored pre-transposed for the [feature, HW] (left-multiply) layout."""
    ks = jax.random.split(key, 7)
    scale = 0.02
    p = {
        "wt_T":   scale * jax.random.normal(ks[0], (c_hid, f_emb), jnp.float32),
        "b_t":    jnp.zeros((c_hid, 1), jnp.float32),
        "win_T":  scale * jax.random.normal(ks[1], (c_hid, c), jnp.float32),
        "b_in":   jnp.zeros((c_hid, 1), jnp.float32),
        "wq_T":   scale * jax.random.normal(ks[2], (d_head, c_hid), jnp.float32),
        "wk":     scale * jax.random.normal(ks[3], (d_cross, d_head), jnp.float32),
        "wv":     scale * jax.random.normal(ks[4], (d_cross, d_head), jnp.float32),
        "wo_T":   scale * jax.random.normal(ks[5], (c_hid, d_head), jnp.float32),
        "wout_T": scale * jax.random.normal(ks[6], (c, c_hid), jnp.float32),
        "b_out":  jnp.zeros((c, 1), jnp.float32),
    }
    # half-precision unet weights (the wrapped unet runs in input_dtype)
    return {k: v.astype(INPUT_DTYPE) for k, v in p.items()}


def unet_casting_forward(sample, timestep, encoder_hidden_states, params):
    """Equivalent of UNetCastingWrapper.forward (returns the output sample)."""
    B, C, H, W = sample.shape
    _, S, D = encoder_hidden_states.shape
    HW = H * W
    F = params["wt_T"].shape[1]

    # wrapper: cast inputs to input_dtype.  NCHW -> [B, C, HW] is a free reshape
    # (no transpose); HW becomes the lane-dense last dim everywhere.
    x = sample.astype(INPUT_DTYPE).reshape(B, C, HW)
    ehs = encoder_hidden_states.astype(INPUT_DTYPE)          # [B, S, D]

    # glue: sinusoidal timestep embedding (diffusers-style), built as [F, B]
    half = F // 2
    freqs = jnp.exp(-math.log(10000.0) * jnp.arange(half, dtype=jnp.float32) / half)
    ang = freqs[:, None] * timestep.astype(jnp.float32)[None, :]       # [half, B]
    temb = jnp.concatenate([jnp.sin(ang), jnp.cos(ang)], axis=0)       # [F, B]
    temb = temb.astype(INPUT_DTYPE)

    weight_order = ["wt_T", "b_t", "win_T", "b_in", "wq_T", "wk", "wv",
                    "wo_T", "wout_T", "b_out"]
    weights = [params[k] for k in weight_order]

    def full(arr):
        # whole-array block, constant index map (single grid step)
        return pl.BlockSpec(arr.shape, lambda i, _nd=arr.ndim: (0,) * _nd)

    out_flat = pl.pallas_call(
        _mini_unet_kernel,
        out_shape=jax.ShapeDtypeStruct((B, C, HW), OUTPUT_DTYPE),
        grid=(1,),
        in_specs=[full(temb), full(x), full(ehs)] + [full(w) for w in weights],
        out_specs=pl.BlockSpec((B, C, HW), lambda i: (0, 0, 0)),
        compiler_params=pltpu.CompilerParams(dimension_semantics=("arbitrary",)),
    )(temb, x, ehs, *weights)

    # glue: [B, C, HW] -> NCHW is a free reshape; dtype is already output_dtype.
    return out_flat.reshape(B, C, H, W)


if __name__ == "__main__":
    key = jax.random.PRNGKey(0)
    k_s, k_e, k_p = jax.random.split(key, 3)

    B, C, H, W = 2, 4, 16, 16     # latent sample (NCHW, like SD latents)
    S, D = 8, 32                  # encoder_hidden_states [B, seq, hidden]
    C_hid, D_head, F_emb = 32, 32, 32

    sample = jax.random.normal(k_s, (B, C, H, W), jnp.float32)
    encoder_hidden_states = jax.random.normal(k_e, (B, S, D), jnp.float32)
    timestep = jnp.array([10, 500], dtype=jnp.int32)

    params = init_params(k_p, C, C_hid, D, D_head, F_emb)

    out = unet_casting_forward(sample, timestep, encoder_hidden_states, params)
    out = jax.block_until_ready(out)

    assert out.shape == (B, C, H, W), out.shape
    assert out.dtype == OUTPUT_DTYPE, out.dtype
    print("KERNEL_OK")
</pallas_src>

<mosaic_0001>
module attributes {stable_mosaic.version = 11 : i64} {
  func.func @_mini_unet_kernel(%arg0: i32, %arg1: memref<32x2xbf16, #tpu.memory_space<vmem>>, %arg2: memref<2x4x256xbf16, #tpu.memory_space<vmem>>, %arg3: memref<2x8x32xbf16, #tpu.memory_space<vmem>>, %arg4: memref<32x32xbf16, #tpu.memory_space<vmem>>, %arg5: memref<32x1xbf16, #tpu.memory_space<vmem>>, %arg6: memref<32x4xbf16, #tpu.memory_space<vmem>>, %arg7: memref<32x1xbf16, #tpu.memory_space<vmem>>, %arg8: memref<32x32xbf16, #tpu.memory_space<vmem>>, %arg9: memref<32x32xbf16, #tpu.memory_space<vmem>>, %arg10: memref<32x32xbf16, #tpu.memory_space<vmem>>, %arg11: memref<32x32xbf16, #tpu.memory_space<vmem>>, %arg12: memref<4x32xbf16, #tpu.memory_space<vmem>>, %arg13: memref<4x1xbf16, #tpu.memory_space<vmem>>, %arg14: memref<2x4x256xf32, #tpu.memory_space<vmem>>) attributes {dimension_semantics = [#tpu.dimension_semantics<arbitrary>], iteration_bounds = array<i64: 1>, scalar_prefetch = 0 : i64, scratch_operands = 0 : i64, tpu.core_type = #tpu.core_type<tc>, window_params = [{pipeline_mode = #tpu.pipeline_mode<synchronous>, transform_indices = @transform_0, window_bounds = array<i64: 32, 2>}, {pipeline_mode = #tpu.pipeline_mode<synchronous>, transform_indices = @transform_1, window_bounds = array<i64: 2, 4, 256>}, {pipeline_mode = #tpu.pipeline_mode<synchronous>, transform_indices = @transform_2, window_bounds = array<i64: 2, 8, 32>}, {pipeline_mode = #tpu.pipeline_mode<synchronous>, transform_indices = @transform_3, window_bounds = array<i64: 32, 32>}, {pipeline_mode = #tpu.pipeline_mode<synchronous>, transform_indices = @transform_4, window_bounds = array<i64: 32, 1>}, {pipeline_mode = #tpu.pipeline_mode<synchronous>, transform_indices = @transform_5, window_bounds = array<i64: 32, 4>}, {pipeline_mode = #tpu.pipeline_mode<synchronous>, transform_indices = @transform_6, window_bounds = array<i64: 32, 1>}, {pipeline_mode = #tpu.pipeline_mode<synchronous>, transform_indices = @transform_7, window_bounds = array<i64: 32, 32>}, {pipeline_mode = #tpu.pipeline_mode<synchronous>, transform_indices = @transform_8, window_bounds = array<i64: 32, 32>}, {pipeline_mode = #tpu.pipeline_mode<synchronous>, transform_indices = @transform_9, window_bounds = array<i64: 32, 32>}, {pipeline_mode = #tpu.pipeline_mode<synchronous>, transform_indices = @transform_10, window_bounds = array<i64: 32, 32>}, {pipeline_mode = #tpu.pipeline_mode<synchronous>, transform_indices = @transform_11, window_bounds = array<i64: 4, 32>}, {pipeline_mode = #tpu.pipeline_mode<synchronous>, transform_indices = @transform_12, window_bounds = array<i64: 4, 1>}, {pipeline_mode = #tpu.pipeline_mode<synchronous>, transform_indices = @transform_13, window_bounds = array<i64: 2, 4, 256>}]} {
    %c0 = arith.constant 0 : index
    %c0_0 = arith.constant 0 : index
    %0 = vector.load %arg4[%c0, %c0_0] : memref<32x32xbf16, #tpu.memory_space<vmem>>, vector<32x32xbf16>
    %c0_1 = arith.constant 0 : index
    %c0_2 = arith.constant 0 : index
    %1 = vector.load %arg1[%c0_1, %c0_2] : memref<32x2xbf16, #tpu.memory_space<vmem>>, vector<32x2xbf16>
    %cst = arith.constant dense<0.000000e+00> : vector<32x2xf32>
    %2 = tpu.matmul %0, %1, %cst {dimension_numbers = #tpu.dot_dimension_numbers<[1], [0], [0], [1], [0, 0, 1, 1], [], []>} : vector<32x32xbf16>, vector<32x2xbf16>, vector<32x2xf32> -> vector<32x2xf32>
    %c0_3 = arith.constant 0 : index
    %c0_4 = arith.constant 0 : index
    %3 = vector.load %arg5[%c0_3, %c0_4] : memref<32x1xbf16, #tpu.memory_space<vmem>>, vector<32x1xbf16>
    %4 = arith.extf %3 : vector<32x1xbf16> to vector<32x1xf32>
    %5 = vector.broadcast %4 : vector<32x1xf32> to vector<32x2xf32>
    %6 = arith.addf %2, %5 : vector<32x2xf32>
    %cst_5 = arith.constant 0.000000e+00 : f32
    %7 = vector.broadcast %cst_5 : f32 to vector<32x2xf32>
    %8 = arith.subf %7, %6 : vector<32x2xf32>
    %9 = math.exp %8 : vector<32x2xf32>
    %cst_6 = arith.constant 1.000000e+00 : f32
    %10 = vector.broadcast %cst_6 : f32 to vector<32x2xf32>
    %11 = arith.addf %10, %9 : vector<32x2xf32>
    %12 = tpu.reciprocal %11 {approx = true} : vector<32x2xf32> -> vector<32x2xf32>
    %13 = arith.mulf %6, %12 : vector<32x2xf32>
    %c0_7 = arith.constant 0 : index
    %c0_8 = arith.constant 0 : index
    %14 = vector.load %arg7[%c0_7, %c0_8] : memref<32x1xbf16, #tpu.memory_space<vmem>>, vector<32x1xbf16>
    %15 = arith.extf %14 : vector<32x1xbf16> to vector<32x1xf32>
    %c0_9 = arith.constant 0 : index
    %c0_10 = arith.constant 0 : index
    %16 = vector.load %arg13[%c0_9, %c0_10] : memref<4x1xbf16, #tpu.memory_space<vmem>>, vector<4x1xbf16>
    %17 = arith.extf %16 : vector<4x1xbf16> to vector<4x1xf32>
    %c0_11 = arith.constant 0 : index
    %c0_12 = arith.constant 0 : index
    %c0_13 = arith.constant 0 : index
    %18 = vector.load %arg2[%c0_11, %c0_12, %c0_13] : memref<2x4x256xbf16, #tpu.memory_space<vmem>>, vector<1x4x256xbf16>
    %19 = vector.shape_cast %18 : vector<1x4x256xbf16> to vector<4x256xbf16>
    %c0_14 = arith.constant 0 : index
    %c0_15 = arith.constant 0 : index
    %c0_16 = arith.constant 0 : index
    %20 = vector.load %arg3[%c0_14, %c0_15, %c0_16] : memref<2x8x32xbf16, #tpu.memory_space<vmem>>, vector<1x8x32xbf16>
    %21 = vector.shape_cast %20 : vector<1x8x32xbf16> to vector<8x32xbf16>
    %22 = vector.extract_strided_slice %13 {offsets = [0, 0], sizes = [32, 1], strides = [1, 1]} : vector<32x2xf32> to vector<32x1xf32>
    %23 = arith.addf %15, %22 : vector<32x1xf32>
    %c0_17 = arith.constant 0 : index
    %c0_18 = arith.constant 0 : index
    %24 = vector.load %arg6[%c0_17, %c0_18] : memref<32x4xbf16, #tpu.memory_space<vmem>>, vector<32x4xbf16>
    %cst_19 = arith.constant dense<0.000000e+00> : vector<32x256xf32>
    %25 = tpu.matmul %24, %19, %cst_19 {dimension_numbers = #tpu.dot_dimension_numbers<[1], [0], [0], [1], [0, 0, 1, 1], [], []>} : vector<32x4xbf16>, vector<4x256xbf16>, vector<32x256xf32> -> vector<32x256xf32>
    %26 = vector.broadcast %23 : vector<32x1xf32> to vector<32x256xf32>
    %27 = arith.addf %25, %26 : vector<32x256xf32>
    %28 = arith.truncf %27 : vector<32x256xf32> to vector<32x256xbf16>
    %c0_20 = arith.constant 0 : index
    %c0_21 = arith.constant 0 : index
    %29 = vector.load %arg8[%c0_20, %c0_21] : memref<32x32xbf16, #tpu.memory_space<vmem>>, vector<32x32xbf16>
    %cst_22 = arith.constant dense<0.000000e+00> : vector<32x256xf32>
    %30 = tpu.matmul %29, %28, %cst_22 {dimension_numbers = #tpu.dot_dimension_numbers<[1], [0], [0], [1], [0, 0, 1, 1], [], []>} : vector<32x32xbf16>, vector<32x256xbf16>, vector<32x256xf32> -> vector<32x256xf32>
    %c0_23 = arith.constant 0 : index
    %c0_24 = arith.constant 0 : index
    %31 = vector.load %arg9[%c0_23, %c0_24] : memref<32x32xbf16, #tpu.memory_space<vmem>>, vector<32x32xbf16>
    %cst_25 = arith.constant dense<0.000000e+00> : vector<8x32xf32>
    %32 = tpu.matmul %21, %31, %cst_25 {dimension_numbers = #tpu.dot_dimension_numbers<[1], [0], [0], [1], [0, 0, 1, 1], [], []>} : vector<8x32xbf16>, vector<32x32xbf16>, vector<8x32xf32> -> vector<8x32xf32>
    %c0_26 = arith.constant 0 : index
    %c0_27 = arith.constant 0 : index
    %33 = vector.load %arg10[%c0_26, %c0_27] : memref<32x32xbf16, #tpu.memory_space<vmem>>, vector<32x32xbf16>
    %cst_28 = arith.constant dense<0.000000e+00> : vector<8x32xf32>
    %34 = tpu.matmul %21, %33, %cst_28 {dimension_numbers = #tpu.dot_dimension_numbers<[1], [0], [0], [1], [0, 0, 1, 1], [], []>} : vector<8x32xbf16>, vector<32x32xbf16>, vector<8x32xf32> -> vector<8x32xf32>
    %35 = arith.truncf %32 : vector<8x32xf32> to vector<8x32xbf16>
    %36 = arith.truncf %30 : vector<32x256xf32> to vector<32x256xbf16>
    %cst_29 = arith.constant dense<0.000000e+00> : vector<8x256xf32>
    %37 = tpu.matmul %35, %36, %cst_29 {dimension_numbers = #tpu.dot_dimension_numbers<[1], [0], [0], [1], [0, 0, 1, 1], [], []>} : vector<8x32xbf16>, vector<32x256xbf16>, vector<8x256xf32> -> vector<8x256xf32>
    %cst_30 = arith.constant 0.176776692 : f32
    %38 = vector.broadcast %cst_30 : f32 to vector<8x256xf32>
    %39 = arith.mulf %37, %38 : vector<8x256xf32>
    %cst_31 = arith.constant dense<0xFF800000> : vector<256xf32>
    %40 = vector.multi_reduction <maximumf>, %39, %cst_31 [0] : vector<8x256xf32> to vector<256xf32>
    %41 = vector.shape_cast %40 : vector<256xf32> to vector<1x256xf32>
    %42 = vector.broadcast %41 : vector<1x256xf32> to vector<8x256xf32>
    %43 = arith.subf %39, %42 : vector<8x256xf32>
    %44 = math.exp %43 : vector<8x256xf32>
    %cst_32 = arith.constant dense<0.000000e+00> : vector<256xf32>
    %45 = vector.multi_reduction <add>, %44, %cst_32 [0] : vector<8x256xf32> to vector<256xf32>
    %46 = vector.shape_cast %45 : vector<256xf32> to vector<1x256xf32>
    %47 = tpu.reciprocal %46 {approx = true} : vector<1x256xf32> -> vector<1x256xf32>
    %48 = vector.broadcast %47 : vector<1x256xf32> to vector<8x256xf32>
    %49 = arith.mulf %44, %48 : vector<8x256xf32>
    %50 = arith.truncf %34 : vector<8x32xf32> to vector<8x32xbf16>
    %51 = arith.truncf %49 : vector<8x256xf32> to vector<8x256xbf16>
    %cst_33 = arith.constant dense<0.000000e+00> : vector<32x256xf32>
    %52 = tpu.matmul %50, %51, %cst_33 {dimension_numbers = #tpu.dot_dimension_numbers<[0], [0], [1], [1], [0, 1, 1, 1], [], []>} : vector<8x32xbf16>, vector<8x256xbf16>, vector<32x256xf32> -> vector<32x256xf32>
    %c0_34 = arith.constant 0 : index
    %c0_35 = arith.constant 0 : index
    %53 = vector.load %arg11[%c0_34, %c0_35] : memref<32x32xbf16, #tpu.memory_space<vmem>>, vector<32x32xbf16>
    %54 = arith.truncf %52 : vector<32x256xf32> to vector<32x256xbf16>
    %cst_36 = arith.constant dense<0.000000e+00> : vector<32x256xf32>
    %55 = tpu.matmul %53, %54, %cst_36 {dimension_numbers = #tpu.dot_dimension_numbers<[1], [0], [0], [1], [0, 0, 1, 1], [], []>} : vector<32x32xbf16>, vector<32x256xbf16>, vector<32x256xf32> -> vector<32x256xf32>
    %56 = arith.addf %27, %55 : vector<32x256xf32>
    %c0_37 = arith.constant 0 : index
    %c0_38 = arith.constant 0 : index
    %57 = vector.load %arg12[%c0_37, %c0_38] : memref<4x32xbf16, #tpu.memory_space<vmem>>, vector<4x32xbf16>
    %58 = arith.truncf %56 : vector<32x256xf32> to vector<32x256xbf16>
    %cst_39 = arith.constant dense<0.000000e+00> : vector<4x256xf32>
    %59 = tpu.matmul %57, %58, %cst_39 {dimension_numbers = #tpu.dot_dimension_numbers<[1], [0], [0], [1], [0, 0, 1, 1], [], []>} : vector<4x32xbf16>, vector<32x256xbf16>, vector<4x256xf32> -> vector<4x256xf32>
    %60 = vector.broadcast %17 : vector<4x1xf32> to vector<4x256xf32>
    %61 = arith.addf %59, %60 : vector<4x256xf32>
    %c0_40 = arith.constant 0 : index
    %c0_41 = arith.constant 0 : index
    %c0_42 = arith.constant 0 : index
    %62 = vector.load %arg14[%c0_40, %c0_41, %c0_42] : memref<2x4x256xf32, #tpu.memory_space<vmem>>, vector<1x4x256xf32>
    %63 = vector.shape_cast %62 : vector<1x4x256xf32> to vector<4x256xf32>
    %64 = vector.shape_cast %61 : vector<4x256xf32> to vector<1x4x256xf32>
    tpu.vector_store %arg14[%c0_40, %c0_41, %c0_42], %64 {strides = array<i32>} : memref<2x4x256xf32, #tpu.memory_space<vmem>>, vector<1x4x256xf32>,
    %c1 = arith.constant 1 : index
    %c0_43 = arith.constant 0 : index
    %c0_44 = arith.constant 0 : index
    %65 = vector.load %arg2[%c1, %c0_43, %c0_44] : memref<2x4x256xbf16, #tpu.memory_space<vmem>>, vector<1x4x256xbf16>
    %66 = vector.shape_cast %65 : vector<1x4x256xbf16> to vector<4x256xbf16>
    %c1_45 = arith.constant 1 : index
    %c0_46 = arith.constant 0 : index
    %c0_47 = arith.constant 0 : index
    %67 = vector.load %arg3[%c1_45, %c0_46, %c0_47] : memref<2x8x32xbf16, #tpu.memory_space<vmem>>, vector<1x8x32xbf16>
    %68 = vector.shape_cast %67 : vector<1x8x32xbf16> to vector<8x32xbf16>
    %69 = vector.extract_strided_slice %13 {offsets = [0, 1], sizes = [32, 1], strides = [1, 1]} : vector<32x2xf32> to vector<32x1xf32>
    %70 = arith.addf %15, %69 : vector<32x1xf32>
    %c0_48 = arith.constant 0 : index
    %c0_49 = arith.constant 0 : index
    %71 = vector.load %arg6[%c0_48, %c0_49] : memref<32x4xbf16, #tpu.memory_space<vmem>>, vector<32x4xbf16>
    %cst_50 = arith.constant dense<0.000000e+00> : vector<32x256xf32>
    %72 = tpu.matmul %71, %66, %cst_50 {dimension_numbers = #tpu.dot_dimension_numbers<[1], [0], [0], [1], [0, 0, 1, 1], [], []>} : vector<32x4xbf16>, vector<4x256xbf16>, vector<32x256xf32> -> vector<32x256xf32>
    %73 = vector.broadcast %70 : vector<32x1xf32> to vector<32x256xf32>
    %74 = arith.addf %72, %73 : vector<32x256xf32>
    %75 = arith.truncf %74 : vector<32x256xf32> to vector<32x256xbf16>
    %c0_51 = arith.constant 0 : index
    %c0_52 = arith.constant 0 : index
    %76 = vector.load %arg8[%c0_51, %c0_52] : memref<32x32xbf16, #tpu.memory_space<vmem>>, vector<32x32xbf16>
    %cst_53 = arith.constant dense<0.000000e+00> : vector<32x256xf32>
    %77 = tpu.matmul %76, %75, %cst_53 {dimension_numbers = #tpu.dot_dimension_numbers<[1], [0], [0], [1], [0, 0, 1, 1], [], []>} : vector<32x32xbf16>, vector<32x256xbf16>, vector<32x256xf32> -> vector<32x256xf32>
    %c0_54 = arith.constant 0 : index
    %c0_55 = arith.constant 0 : index
    %78 = vector.load %arg9[%c0_54, %c0_55] : memref<32x32xbf16, #tpu.memory_space<vmem>>, vector<32x32xbf16>
    %cst_56 = arith.constant dense<0.000000e+00> : vector<8x32xf32>
    %79 = tpu.matmul %68, %78, %cst_56 {dimension_numbers = #tpu.dot_dimension_numbers<[1], [0], [0], [1], [0, 0, 1, 1], [], []>} : vector<8x32xbf16>, vector<32x32xbf16>, vector<8x32xf32> -> vector<8x32xf32>
    %c0_57 = arith.constant 0 : index
    %c0_58 = arith.constant 0 : index
    %80 = vector.load %arg10[%c0_57, %c0_58] : memref<32x32xbf16, #tpu.memory_space<vmem>>, vector<32x32xbf16>
    %cst_59 = arith.constant dense<0.000000e+00> : vector<8x32xf32>
    %81 = tpu.matmul %68, %80, %cst_59 {dimension_numbers = #tpu.dot_dimension_numbers<[1], [0], [0], [1], [0, 0, 1, 1], [], []>} : vector<8x32xbf16>, vector<32x32xbf16>, vector<8x32xf32> -> vector<8x32xf32>
    %82 = arith.truncf %79 : vector<8x32xf32> to vector<8x32xbf16>
    %83 = arith.truncf %77 : vector<32x256xf32> to vector<32x256xbf16>
    %cst_60 = arith.constant dense<0.000000e+00> : vector<8x256xf32>
    %84 = tpu.matmul %82, %83, %cst_60 {dimension_numbers = #tpu.dot_dimension_numbers<[1], [0], [0], [1], [0, 0, 1, 1], [], []>} : vector<8x32xbf16>, vector<32x256xbf16>, vector<8x256xf32> -> vector<8x256xf32>
    %cst_61 = arith.constant 0.176776692 : f32
    %85 = vector.broadcast %cst_61 : f32 to vector<8x256xf32>
    %86 = arith.mulf %84, %85 : vector<8x256xf32>
    %cst_62 = arith.constant dense<0xFF800000> : vector<256xf32>
    %87 = vector.multi_reduction <maximumf>, %86, %cst_62 [0] : vector<8x256xf32> to vector<256xf32>
    %88 = vector.shape_cast %87 : vector<256xf32> to vector<1x256xf32>
    %89 = vector.broadcast %88 : vector<1x256xf32> to vector<8x256xf32>
    %90 = arith.subf %86, %89 : vector<8x256xf32>
    %91 = math.exp %90 : vector<8x256xf32>
    %cst_63 = arith.constant dense<0.000000e+00> : vector<256xf32>
    %92 = vector.multi_reduction <add>, %91, %cst_63 [0] : vector<8x256xf32> to vector<256xf32>
    %93 = vector.shape_cast %92 : vector<256xf32> to vector<1x256xf32>
    %94 = tpu.reciprocal %93 {approx = true} : vector<1x256xf32> -> vector<1x256xf32>
    %95 = vector.broadcast %94 : vector<1x256xf32> to vector<8x256xf32>
    %96 = arith.mulf %91, %95 : vector<8x256xf32>
    %97 = arith.truncf %81 : vector<8x32xf32> to vector<8x32xbf16>
    %98 = arith.truncf %96 : vector<8x256xf32> to vector<8x256xbf16>
    %cst_64 = arith.constant dense<0.000000e+00> : vector<32x256xf32>
    %99 = tpu.matmul %97, %98, %cst_64 {dimension_numbers = #tpu.dot_dimension_numbers<[0], [0], [1], [1], [0, 1, 1, 1], [], []>} : vector<8x32xbf16>, vector<8x256xbf16>, vector<32x256xf32> -> vector<32x256xf32>
    %c0_65 = arith.constant 0 : index
    %c0_66 = arith.constant 0 : index
    %100 = vector.load %arg11[%c0_65, %c0_66] : memref<32x32xbf16, #tpu.memory_space<vmem>>, vector<32x32xbf16>
    %101 = arith.truncf %99 : vector<32x256xf32> to vector<32x256xbf16>
    %cst_67 = arith.constant dense<0.000000e+00> : vector<32x256xf32>
    %102 = tpu.matmul %100, %101, %cst_67 {dimension_numbers = #tpu.dot_dimension_numbers<[1], [0], [0], [1], [0, 0, 1, 1], [], []>} : vector<32x32xbf16>, vector<32x256xbf16>, vector<32x256xf32> -> vector<32x256xf32>
    %103 = arith.addf %74, %102 : vector<32x256xf32>
    %c0_68 = arith.constant 0 : index
    %c0_69 = arith.constant 0 : index
    %104 = vector.load %arg12[%c0_68, %c0_69] : memref<4x32xbf16, #tpu.memory_space<vmem>>, vector<4x32xbf16>
    %105 = arith.truncf %103 : vector<32x256xf32> to vector<32x256xbf16>
    %cst_70 = arith.constant dense<0.000000e+00> : vector<4x256xf32>
    %106 = tpu.matmul %104, %105, %cst_70 {dimension_numbers = #tpu.dot_dimension_numbers<[1], [0], [0], [1], [0, 0, 1, 1], [], []>} : vector<4x32xbf16>, vector<32x256xbf16>, vector<4x256xf32> -> vector<4x256xf32>
    %107 = vector.broadcast %17 : vector<4x1xf32> to vector<4x256xf32>
    %108 = arith.addf %106, %107 : vector<4x256xf32>
    %c1_71 = arith.constant 1 : index
    %c0_72 = arith.constant 0 : index
    %c0_73 = arith.constant 0 : index
    %109 = vector.load %arg14[%c1_71, %c0_72, %c0_73] : memref<2x4x256xf32, #tpu.memory_space<vmem>>, vector<1x4x256xf32>
    %110 = vector.shape_cast %109 : vector<1x4x256xf32> to vector<4x256xf32>
    %111 = vector.shape_cast %108 : vector<4x256xf32> to vector<1x4x256xf32>
    tpu.vector_store %arg14[%c1_71, %c0_72, %c0_73], %111 {strides = array<i32>} : memref<2x4x256xf32, #tpu.memory_space<vmem>>, vector<1x4x256xf32>,
    return
  }
  func.func @transform_0(%arg0: i32) -> (i32, i32) {
    %c0_i32 = arith.constant 0 : i32
    %c0_i32_0 = arith.constant 0 : i32
    %c0_i32_1 = arith.constant 0 : i32
    return %c0_i32, %c0_i32_0 : i32, i32
  }
  func.func @transform_1(%arg0: i32) -> (i32, i32, i32) {
    %c0_i32 = arith.constant 0 : i32
    %c0_i32_0 = arith.constant 0 : i32
    %c0_i32_1 = arith.constant 0 : i32
    %c0_i32_2 = arith.constant 0 : i32
    return %c0_i32, %c0_i32_0, %c0_i32_1 : i32, i32, i32
  }
  func.func @transform_2(%arg0: i32) -> (i32, i32, i32) {
    %c0_i32 = arith.constant 0 : i32
    %c0_i32_0 = arith.constant 0 : i32
    %c0_i32_1 = arith.constant 0 : i32
    %c0_i32_2 = arith.constant 0 : i32
    return %c0_i32, %c0_i32_0, %c0_i32_1 : i32, i32, i32
  }
  func.func @transform_3(%arg0: i32) -> (i32, i32) {
    %c0_i32 = arith.constant 0 : i32
    %c0_i32_0 = arith.constant 0 : i32
    %c0_i32_1 = arith.constant 0 : i32
    return %c0_i32, %c0_i32_0 : i32, i32
  }
  func.func @transform_4(%arg0: i32) -> (i32, i32) {
    %c0_i32 = arith.constant 0 : i32
    %c0_i32_0 = arith.constant 0 : i32
    %c0_i32_1 = arith.constant 0 : i32
    return %c0_i32, %c0_i32_0 : i32, i32
  }
  func.func @transform_5(%arg0: i32) -> (i32, i32) {
    %c0_i32 = arith.constant 0 : i32
    %c0_i32_0 = arith.constant 0 : i32
    %c0_i32_1 = arith.constant 0 : i32
    return %c0_i32, %c0_i32_0 : i32, i32
  }
  func.func @transform_6(%arg0: i32) -> (i32, i32) {
    %c0_i32 = arith.constant 0 : i32
    %c0_i32_0 = arith.constant 0 : i32
    %c0_i32_1 = arith.constant 0 : i32
    return %c0_i32, %c0_i32_0 : i32, i32
  }
  func.func @transform_7(%arg0: i32) -> (i32, i32) {
    %c0_i32 = arith.constant 0 : i32
    %c0_i32_0 = arith.constant 0 : i32
    %c0_i32_1 = arith.constant 0 : i32
    return %c0_i32, %c0_i32_0 : i32, i32
  }
  func.func @transform_8(%arg0: i32) -> (i32, i32) {
    %c0_i32 = arith.constant 0 : i32
    %c0_i32_0 = arith.constant 0 : i32
    %c0_i32_1 = arith.constant 0 : i32
    return %c0_i32, %c0_i32_0 : i32, i32
  }
  func.func @transform_9(%arg0: i32) -> (i32, i32) {
    %c0_i32 = arith.constant 0 : i32
    %c0_i32_0 = arith.constant 0 : i32
    %c0_i32_1 = arith.constant 0 : i32
    return %c0_i32, %c0_i32_0 : i32, i32
  }
  func.func @transform_10(%arg0: i32) -> (i32, i32) {
    %c0_i32 = arith.constant 0 : i32
    %c0_i32_0 = arith.constant 0 : i32
    %c0_i32_1 = arith.constant 0 : i32
    return %c0_i32, %c0_i32_0 : i32, i32
  }
  func.func @transform_11(%arg0: i32) -> (i32, i32) {
    %c0_i32 = arith.constant 0 : i32
    %c0_i32_0 = arith.constant 0 : i32
    %c0_i32_1 = arith.constant 0 : i32
    return %c0_i32, %c0_i32_0 : i32, i32
  }
  func.func @transform_12(%arg0: i32) -> (i32, i32) {
    %c0_i32 = arith.constant 0 : i32
    %c0_i32_0 = arith.constant 0 : i32
    %c0_i32_1 = arith.constant 0 : i32
    return %c0_i32, %c0_i32_0 : i32, i32
  }
  func.func @transform_13(%arg0: i32) -> (i32, i32, i32) {
    %c0_i32 = arith.constant 0 : i32
    %c0_i32_0 = arith.constant 0 : i32
    %c0_i32_1 = arith.constant 0 : i32
    %c0_i32_2 = arith.constant 0 : i32
    return %c0_i32, %c0_i32_0, %c0_i32_1 : i32, i32, i32
  }
}

</mosaic_0001>

<llo_original>
// kernel: tpu_custom_call.1
$region0: #{tpu_custom_call.1}
  #allocation0 [shape = 'u32[]', space=smem, size = 0x4, offset = 0x4, fixed_abs, tag = 'smem constant byte address 0x4 - core index']
  #allocation1 [shape = 'u32[144,128]{1,0:T(1,128)}', space=vmem, size = 0x12000, scoped, tag = 'internal scratch']
  %s0 = inlined_call_operand.vmem [shape: bf16[32,2], index: 0, kind: input, shape index: {}]
  %s1 = inlined_call_operand.hbm [shape: bf16[2,4,256], index: 1, kind: input, shape index: {}]
  %s2 = inlined_call_operand.hbm [shape: bf16[2,8,32], index: 2, kind: input, shape index: {}]
  %s3 = inlined_call_operand.vmem [shape: bf16[32,32], index: 3, kind: input, shape index: {}]
  %s4 = inlined_call_operand.vmem [shape: bf16[32,1], index: 4, kind: input, shape index: {}]
  %s5 = inlined_call_operand.vmem [shape: bf16[32,4], index: 5, kind: input, shape index: {}]
  %s6 = inlined_call_operand.vmem [shape: bf16[32,1], index: 6, kind: input, shape index: {}]
  %s7 = inlined_call_operand.vmem [shape: bf16[32,32], index: 7, kind: input, shape index: {}]
  %s8 = inlined_call_operand.vmem [shape: bf16[32,32], index: 8, kind: input, shape index: {}]
  %s9 = inlined_call_operand.vmem [shape: bf16[32,32], index: 9, kind: input, shape index: {}]
  %s10 = inlined_call_operand.vmem [shape: bf16[32,32], index: 10, kind: input, shape index: {}]
  %s11 = inlined_call_operand.vmem [shape: bf16[4,32], index: 11, kind: input, shape index: {}]
  %s12 = inlined_call_operand.vmem [shape: bf16[4,1], index: 12, kind: input, shape index: {}]
  %s13 = inlined_call_operand.hbm [shape: f32[2,4,256], index: 13, kind: output, shape index: {}]
  %s14 = sld [smem:[#allocation0]]
  $region70: #{tpu_custom_call.1} parent=0
    _
  %s16 = ssub.s32 1, %s14
  %s17 = scalar_select 0, %s16, %s14
  $region1: #{tpu_custom_call.1} parent=0
    #allocation2 [shape = 'u8[4096]{0}', space=vmem, size = 0x1000, scoped, tag = 'input window, operand 1, single buffered']
    #allocation3 [shape = 's32[1]{0}', space=sflag, size = 0x4, scoped, tag = 'scoped memory for tpu_custom_call.1']
    #allocation4 [shape = 's32[1]{0}', space=sflag, size = 0x4, scoped, tag = 'scoped memory for tpu_custom_call.1']
    #allocation5 [shape = 'u8[4096]{0}', space=vmem, size = 0x1000, scoped, tag = 'input window, operand 2, single buffered']
    #allocation6 [shape = 's32[1]{0}', space=sflag, size = 0x4, scoped, tag = 'scoped memory for tpu_custom_call.1']
    #allocation7 [shape = 'u8[8192]{0}', space=vmem, size = 0x2000, scoped, tag = 'output window, operand 0, single buffered']
    %18 = vsyncpa [#allocation3], 0
    %19 = vsyncpa [#allocation6], 0
    %20 = vsyncpa [#allocation4], 0
    // Predicated region
    $region2: #{tpu_custom_call.1} parent=1 // pred_check
      _
    $region3: #{tpu_custom_call.1} parent=1 // pred_check_branch
      %22 = sbr.rel (0) target = $region5
    $region4: #{tpu_custom_call.1} parent=1 // pred_region
      _
    $region5: #{tpu_custom_call.1} parent=1 // pred_fallthru
      _
    // Predicated region
    $region6: #{tpu_custom_call.1} parent=1 // pred_check
      _
    $region7: #{tpu_custom_call.1} parent=1 // pred_check_branch
      %24 = sbr.rel (0) target = $region9
    $region8: #{tpu_custom_call.1} parent=1 // pred_region
      %s26 = ssub.s32 128, 128
      %27 = vsyncadd [#allocation3], %s26
      %s28 = sshll.u32 [#allocation2], 4
      %s29 = int_to_ptr.vmem [resolvable:$true] %s28
      %34 = dma.hbm_to_vmem [thread:$0]  %s1, 128, %s29, [#allocation3], 64, 64, 4
    $region9: #{tpu_custom_call.1} parent=1 // pred_fallthru
      _
    // Predicated region
    $region10: #{tpu_custom_call.1} parent=1 // pred_check
      _
    $region11: #{tpu_custom_call.1} parent=1 // pred_check_branch
      %36 = sbr.rel (0) target = $region13
    $region12: #{tpu_custom_call.1} parent=1 // pred_region
      %s38 = ssub.s32 128, 128
      %39 = vsyncadd [#allocation6], %s38
      %s40 = sshll.u32 [#allocation5], 4
      %s41 = int_to_ptr.vmem [resolvable:$true] %s40
      %46 = dma.hbm_to_vmem [thread:$0]  %s2, 128, %s41, [#allocation6], 64, 64, 4
    $region13: #{tpu_custom_call.1} parent=1 // pred_fallthru
      _
    // Predicated region
    $region14: #{tpu_custom_call.1} parent=1 // pred_check
      _
    $region15: #{tpu_custom_call.1} parent=1 // pred_check_branch
      %48 = sbr.rel (0) target = $region17
    $region16: #{tpu_custom_call.1} parent=1 // pred_region
      _
    $region17: #{tpu_custom_call.1} parent=1 // pred_fallthru
      _
    // Predicated region
    $region18: #{tpu_custom_call.1} parent=1 // pred_check
      _
    $region19: #{tpu_custom_call.1} parent=1 // pred_check_branch
      %50 = sbr.rel (0) target = $region21
    $region20: #{tpu_custom_call.1} parent=1 // pred_region
      _
    $region21: #{tpu_custom_call.1} parent=1 // pred_fallthru
      _
    // Predicated region
    $region22: #{tpu_custom_call.1} parent=1 // pred_check
      _
    $region23: #{tpu_custom_call.1} parent=1 // pred_check_branch
      %52 = sbr.rel (0) target = $region25
    $region24: #{tpu_custom_call.1} parent=1 // pred_region
      _
    $region25: #{tpu_custom_call.1} parent=1 // pred_fallthru
      _
    // Predicated region
    $region26: #{tpu_custom_call.1} parent=1 // pred_check
      _
    $region27: #{tpu_custom_call.1} parent=1 // pred_check_branch
      %54 = sbr.rel (0) target = $region29
    $region28: #{tpu_custom_call.1} parent=1 // pred_region
      _
    $region29: #{tpu_custom_call.1} parent=1 // pred_fallthru
      _
    // Predicated region
    $region30: #{tpu_custom_call.1} parent=1 // pred_check
      _
    $region31: #{tpu_custom_call.1} parent=1 // pred_check_branch
      %56 = sbr.rel (0) target = $region33
    $region32: #{tpu_custom_call.1} parent=1 // pred_region
      _
    $region33: #{tpu_custom_call.1} parent=1 // pred_fallthru
      _
    // Predicated region
    $region34: #{tpu_custom_call.1} parent=1 // pred_check
      _
    $region35: #{tpu_custom_call.1} parent=1 // pred_check_branch
      %58 = sbr.rel (0) target = $region37
    $region36: #{tpu_custom_call.1} parent=1 // pred_region
      _
    $region37: #{tpu_custom_call.1} parent=1 // pred_fallthru
      _
    // Predicated region
    $region38: #{tpu_custom_call.1} parent=1 // pred_check
      _
    $region39: #{tpu_custom_call.1} parent=1 // pred_check_branch
      %60 = sbr.rel (0) target = $region41
    $region40: #{tpu_custom_call.1} parent=1 // pred_region
      _
    $region41: #{tpu_custom_call.1} parent=1 // pred_fallthru
      _
    // Predicated region
    $region42: #{tpu_custom_call.1} parent=1 // pred_check
      _
    $region43: #{tpu_custom_call.1} parent=1 // pred_check_branch
      %62 = sbr.rel (0) target = $region45
    $region44: #{tpu_custom_call.1} parent=1 // pred_region
      _
    $region45: #{tpu_custom_call.1} parent=1 // pred_fallthru
      _
    // Predicated region
    $region46: #{tpu_custom_call.1} parent=1 // pred_check
      _
    $region47: #{tpu_custom_call.1} parent=1 // pred_check_branch
      %64 = sbr.rel (0) target = $region49
    $region48: #{tpu_custom_call.1} parent=1 // pred_region
      _
    $region49: #{tpu_custom_call.1} parent=1 // pred_fallthru
      _
    // Predicated region
    $region50: #{tpu_custom_call.1} parent=1 // pred_check
      _
    $region51: #{tpu_custom_call.1} parent=1 // pred_check_branch
      %66 = sbr.rel (0) target = $region53
    $region52: #{tpu_custom_call.1} parent=1 // pred_region
      _
    $region53: #{tpu_custom_call.1} parent=1 // pred_fallthru
      _
    // Predicated region
    $region54: #{tpu_custom_call.1} parent=1 // pred_check
      _
    $region55: #{tpu_custom_call.1} parent=1 // pred_check_branch
      %68 = sbr.rel (0) target = $region57
    $region56: #{tpu_custom_call.1} parent=1 // pred_region
      %69 = dma.done [#allocation3], 128
    $region57: #{tpu_custom_call.1} parent=1 // pred_fallthru
      _
    // Predicated region
    $region58: #{tpu_custom_call.1} parent=1 // pred_check
      _
    $region59: #{tpu_custom_call.1} parent=1 // pred_check_branch
      %71 = sbr.rel (0) target = $region61
    $region60: #{tpu_custom_call.1} parent=1 // pred_region
      %72 = dma.done [#allocation6], 128
    $region61: #{tpu_custom_call.1} parent=1 // pred_fallthru
      _
    %v74 = vld [vmem:[%s3] sm:$0xf]
    %v75 = vld [vmem:[%s3 + $0x4] sm:$0xf]
    %v76 = vld [vmem:[%s3 + $0x8] sm:$0xf]
    %v77 = vld [vmem:[%s3 + $0xc] sm:$0xf]
    %v78 = vld [vmem:[%s0] sm:$0xf]
    %v79 = vld [vmem:[%s0 + $0x4] sm:$0xf]
    %v80 = vld [vmem:[%s0 + $0x8] sm:$0xf]
    %v81 = vld [vmem:[%s0 + $0xc] sm:$0xf]
    %v82 = vld [vmem:[%s4] sm:$0xf]
    %v83 = vld [vmem:[%s4 + $0x4] sm:$0xf]
    %v84 = vld [vmem:[%s4 + $0x8] sm:$0xf]
    %v85 = vld [vmem:[%s4 + $0xc] sm:$0xf]
    %v86 = vunpack.c.l.bf16 %v82
    %v87 = vunpack.c.l.bf16 %v83
    %v88 = vunpack.c.l.bf16 %v84
    %v89 = vunpack.c.l.bf16 %v85
    %91 = vset.pattern.permute.xlu0 0
    %92 = vperm.xlu0 %91, %v86
    %v93 = vpop.permute.xlu0 %92
    %96 = vset.pattern.permute.xlu0 0
    %97 = vperm.xlu0 %96, %v87
    %v98 = vpop.permute.xlu0 %97
    %101 = vset.pattern.permute.xlu0 0
    %102 = vperm.xlu0 %101, %v88
    %v103 = vpop.permute.xlu0 %102
    %106 = vset.pattern.permute.xlu0 0
    %107 = vperm.xlu0 %106, %v89
    %v108 = vpop.permute.xlu0 %107
    %v114 = vunpack.c.l.b16 %v74
    %v115 = vunpack.c.l.b16 %v75
    %v116 = vunpack.c.l.b16 %v76
    %v117 = vunpack.c.l.b16 %v77
    %v118 = vpack.c.b16 %v115, %v114
    %v119 = vpack.c.b16 %v117, %v116
    %v124 = vunpack.c.l.b16 %v78
    %v125 = vunpack.c.l.b16 %v79
    %v126 = vunpack.c.l.b16 %v80
    %v127 = vunpack.c.l.b16 %v81
    %v128 = vpack.c.b16 %v125, %v124
    %v129 = vpack.c.b16 %v127, %v126
    %vm132 = vcmask 261120
    %v134 = vsel %vm132, %v118, 0
    %v137 = vsel %vm132, %v119, 0
    %139 = vmatprep.subr.bf16.mxu0 0
    %140 = vmatpush1.bf16.msra.mxu0 %v128
    %141 = vmatprep.subr.bf16.mxu0 0
    %142 = vmatpush1.bf16.msra.mxu0 %v129
    %143 = vmatprep.subr.bf16.mxu0 0
    %144 = vmatpush1.bf16.msra.mxu0 0
    %145 = vmatprep.subr.bf16.mxu0 0
    %146 = vmatpush1.bf16.msra.mxu0 0
    %147 = vmatprep.subr.bf16.mxu0 0
    %148 = vmatpush1.bf16.msra.mxu0 0
    %149 = vmatprep.subr.bf16.mxu0 0
    %150 = vmatpush1.bf16.msra.mxu0 0
    %151 = vmatprep.subr.bf16.mxu0 0
    %152 = vmatpush1.bf16.msra.mxu0 0
    %153 = vmatprep.subr.bf16.mxu0 0
    %154 = vmatpush1.bf16.msra.mxu0 0
    %155 = vmatprep.subr.bf16.mxu0 0
    %156 = vmatpush1.bf16.msra.mxu0 0
    %157 = vmatprep.subr.bf16.mxu0 0
    %158 = vmatpush1.bf16.msra.mxu0 0
    %159 = vmatprep.subr.bf16.mxu0 0
    %160 = vmatpush1.bf16.msra.mxu0 0
    %161 = vmatprep.subr.bf16.mxu0 0
    %162 = vmatpush1.bf16.msra.mxu0 0
    %163 = vmatprep.subr.bf16.mxu0 0
    %164 = vmatpush1.bf16.msra.mxu0 0
    %165 = vmatprep.subr.bf16.mxu0 0
    %166 = vmatpush1.bf16.msra.mxu0 0
    %167 = vmatprep.subr.bf16.mxu0 0
    %168 = vmatpush1.bf16.msra.mxu0 0
    %169 = vmatprep.subr.bf16.mxu0 0
    %170 = vmatpush1.bf16.msra.mxu0 0
    %171 = vmatprep.mubr.bf16.mxu0 0
    %172 = vmatmul.mubr.bf16.gmra.mrb[0].mxu0 %v134
    %v173 = vpop.f32.mrb[0].mxu0
    %v174 = vadd.f32 %v93, %v173
    %v175 = vpop.f32.mrb[0].mxu0
    %v176 = vpop.f32.mrb[0].mxu0
    %v177 = vadd.f32 %v98, %v176
    %v178 = vpop.f32.mrb[0].mxu0
    %179 = vmatprep.mubr.bf16.mxu0 0
    %180 = vmatmul.mubr.bf16.gmra.mrb[0].mxu0 %v137
    %v181 = vpop.f32.mrb[0].mxu0
    %v182 = vadd.f32 %v103, %v181
    %v183 = vpop.f32.mrb[0].mxu0
    %v184 = vpop.f32.mrb[0].mxu0
    %v185 = vadd.f32 %v108, %v184
    %v186 = vpop.f32.mrb[0].mxu0
    %187 = vdwg.mxu0
    %v188 = vsub.f32 0.0, %v174
    %v189 = vsub.f32 0.0, %v177
    %v190 = vsub.f32 0.0, %v182
    %v191 = vsub.f32 0.0, %v185
    %v192 = vmul.f32 %v188, 1.442695
    %v193 = vpow.pop %v192
    %v194 = vmul.f32 %v189, 1.442695
    %v195 = vpow.pop %v194
    %v196 = vmul.f32 %v190, 1.442695
    %v197 = vpow.pop %v196
    %v198 = vmul.f32 %v191, 1.442695
    %v199 = vpow.pop %v198
    %v200 = vadd.f32 %v193, 1.0
    %v201 = vadd.f32 %v195, 1.0
    %v202 = vadd.f32 %v197, 1.0
    %v203 = vadd.f32 %v199, 1.0
    %v204 = vrcp.pop %v200
    %v205 = vrcp.pop %v201
    %v206 = vrcp.pop %v202
    %v207 = vrcp.pop %v203
    %v208 = vmul.f32 %v174, %v204
    %v209 = vmul.f32 %v177, %v205
    %v210 = vmul.f32 %v182, %v206
    %v211 = vmul.f32 %v185, %v207
    %v212 = vld [vmem:[%s6] sm:$0xf]
    %v213 = vld [vmem:[%s6 + $0x4] sm:$0xf]
    %v214 = vld [vmem:[%s6 + $0x8] sm:$0xf]
    %v215 = vld [vmem:[%s6 + $0xc] sm:$0xf]
    %v216 = vunpack.c.l.bf16 %v212
    %v217 = vunpack.c.l.bf16 %v213
    %v218 = vunpack.c.l.bf16 %v214
    %v219 = vunpack.c.l.bf16 %v215
    %v220 = vld [vmem:[%s12] sm:$0x3]
    %v221 = vunpack.c.l.bf16 %v220
    %v222 = vld [vmem:[#allocation2] sm:$0xf]
    %v223 = vld [vmem:[#allocation5] sm:$0xf]
    %v224 = vadd.f32 %v216, %v208
    %v225 = vadd.f32 %v217, %v209
    %v226 = vadd.f32 %v218, %v210
    %v227 = vadd.f32 %v219, %v211
    %v228 = vld [vmem:[%s5] sm:$0xf]
    %v229 = vld [vmem:[%s5 + $0x4] sm:$0xf]
    %v230 = vld [vmem:[%s5 + $0x8] sm:$0xf]
    %v231 = vld [vmem:[%s5 + $0xc] sm:$0xf]
    %233 = vset.pattern.permute.xlu0 0
    %234 = vperm.xlu0 %233, %v224
    %v235 = vpop.permute.xlu0 %234
    %238 = vset.pattern.permute.xlu0 0
    %239 = vperm.xlu0 %238, %v225
    %v240 = vpop.permute.xlu0 %239
    %243 = vset.pattern.permute.xlu0 0
    %244 = vperm.xlu0 %243, %v226
    %v245 = vpop.permute.xlu0 %244
    %248 = vset.pattern.permute.xlu0 0
    %249 = vperm.xlu0 %248, %v227
    %v250 = vpop.permute.xlu0 %249
    %v256 = vunpack.c.l.b16 %v228
    %v257 = vunpack.c.l.b16 %v229
    %v258 = vunpack.c.l.b16 %v230
    %v259 = vunpack.c.l.b16 %v231
    %v260 = vpack.c.b16 %v257, %v256
    %v261 = vpack.c.b16 %v259, %v258
    %v264 = vunpack.c.l.s4 1983009808
    %v265 = vunpack.c.0.s8 %v264
    %v266 = vlaneseq
    %v267 = vshrl.u32 %v266, 7
    %v268 = vsub.s32 %v265, %v267
    %v269 = vrot.slane %v222, %v268
    %v270 = vcombine.high %v269, %v269
    %vm271 = vcmask 31744
    %v273 = vsel %vm271, %v260, 0
    %v276 = vsel %vm271, %v261, 0
    %vm278 = vcmask 1041408
    %v280 = vsel %vm278, %v269, 0
    %v283 = vsel %vm278, %v270, 0
    %285 = vmatprep.subr.bf16.mxu0 %v283
    %286 = vmatpush1.bf16.msra.mxu0 %v280
    %287 = vmatprep.subr.bf16.mxu0 0
    %288 = vmatpush1.bf16.msra.mxu0 0
    %289 = vmatprep.subr.bf16.mxu0 0
    %290 = vmatpush1.bf16.msra.mxu0 0
    %291 = vmatprep.subr.bf16.mxu0 0
    %292 = vmatpush1.bf16.msra.mxu0 0
    %293 = vmatprep.subr.bf16.mxu0 0
    %294 = vmatpush1.bf16.msra.mxu0 0
    %295 = vmatprep.subr.bf16.mxu0 0
    %296 = vmatpush1.bf16.msra.mxu0 0
    %297 = vmatprep.subr.bf16.mxu0 0
    %298 = vmatpush1.bf16.msra.mxu0 0
    %299 = vmatprep.subr.bf16.mxu0 0
    %300 = vmatpush1.bf16.msra.mxu0 0
    %301 = vmatprep.subr.bf16.mxu0 0
    %302 = vmatpush1.bf16.msra.mxu0 0
    %303 = vmatprep.subr.bf16.mxu0 0
    %304 = vmatpush1.bf16.msra.mxu0 0
    %305 = vmatprep.subr.bf16.mxu0 0
    %306 = vmatpush1.bf16.msra.mxu0 0
    %307 = vmatprep.subr.bf16.mxu0 0
    %308 = vmatpush1.bf16.msra.mxu0 0
    %309 = vmatprep.subr.bf16.mxu0 0
    %310 = vmatpush1.bf16.msra.mxu0 0
    %311 = vmatprep.subr.bf16.mxu0 0
    %312 = vmatpush1.bf16.msra.mxu0 0
    %313 = vmatprep.subr.bf16.mxu0 0
    %314 = vmatpush1.bf16.msra.mxu0 0
    %315 = vmatprep.subr.bf16.mxu0 0
    %316 = vmatpush1.bf16.msra.mxu0 0
    %317 = vmatprep.mubr.bf16.mxu0 0
    %318 = vmatmul.mubr.bf16.gmra.mrb[0].mxu0 %v273
    %v319 = vpop.f32.mrb[0].mxu0
    %v320 = vadd.f32 %v235, %v319
    %v321 = vpop.f32.mrb[0].mxu0
    %v322 = vadd.f32 %v235, %v321
    %v323 = vpop.f32.mrb[0].mxu0
    %v324 = vadd.f32 %v240, %v323
    %v325 = vpop.f32.mrb[0].mxu0
    %v326 = vadd.f32 %v240, %v325
    %327 = vmatprep.mubr.bf16.mxu0 0
    %328 = vmatmul.mubr.bf16.gmra.mrb[0].mxu0 %v276
    %v329 = vpop.f32.mrb[0].mxu0
    %v330 = vadd.f32 %v245, %v329
    %v331 = vpop.f32.mrb[0].mxu0
    %v332 = vadd.f32 %v245, %v331
    %v333 = vpop.f32.mrb[0].mxu0
    %v334 = vadd.f32 %v250, %v333
    %v335 = vpop.f32.mrb[0].mxu0
    %v336 = vadd.f32 %v250, %v335
    %337 = vdwg.mxu0
    %v338 = vpack.c.bf16 %v324, %v320
    %v339 = vpack.c.bf16 %v326, %v322
    %v340 = vpack.c.bf16 %v334, %v330
    %v341 = vpack.c.bf16 %v336, %v332
    %v342 = vld [vmem:[%s7] sm:$0xf]
    %v343 = vld [vmem:[%s7 + $0x4] sm:$0xf]
    %v344 = vld [vmem:[%s7 + $0x8] sm:$0xf]
    %v345 = vld [vmem:[%s7 + $0xc] sm:$0xf]
    %v350 = vunpack.c.l.b16 %v342
    %v351 = vunpack.c.l.b16 %v343
    %v352 = vunpack.c.l.b16 %v344
    %v353 = vunpack.c.l.b16 %v345
    %v354 = vpack.c.b16 %v351, %v350
    %v355 = vpack.c.b16 %v353, %v352
    %v357 = vsel %vm132, %v354, 0
    %v360 = vsel %vm132, %v355, 0
    %362 = vmatprep.subr.bf16.mxu0 %v339
    %363 = vmatpush1.bf16.msra.mxu0 %v338
    %364 = vmatprep.subr.bf16.mxu0 %v341
    %365 = vmatpush1.bf16.msra.mxu0 %v340
    %366 = vmatprep.subr.bf16.mxu0 0
    %367 = vmatpush1.bf16.msra.mxu0 0
    %368 = vmatprep.subr.bf16.mxu0 0
    %369 = vmatpush1.bf16.msra.mxu0 0
    %370 = vmatprep.subr.bf16.mxu0 0
    %371 = vmatpush1.bf16.msra.mxu0 0
    %372 = vmatprep.subr.bf16.mxu0 0
    %373 = vmatpush1.bf16.msra.mxu0 0
    %374 = vmatprep.subr.bf16.mxu0 0
    %375 = vmatpush1.bf16.msra.mxu0 0
    %376 = vmatprep.subr.bf16.mxu0 0
    %377 = vmatpush1.bf16.msra.mxu0 0
    %378 = vmatprep.subr.bf16.mxu0 0
    %379 = vmatpush1.bf16.msra.mxu0 0
    %380 = vmatprep.subr.bf16.mxu0 0
    %381 = vmatpush1.bf16.msra.mxu0 0
    %382 = vmatprep.subr.bf16.mxu0 0
    %383 = vmatpush1.bf16.msra.mxu0 0
    %384 = vmatprep.subr.bf16.mxu0 0
    %385 = vmatpush1.bf16.msra.mxu0 0
    %386 = vmatprep.subr.bf16.mxu0 0
    %387 = vmatpush1.bf16.msra.mxu0 0
    %388 = vmatprep.subr.bf16.mxu0 0
    %389 = vmatpush1.bf16.msra.mxu0 0
    %390 = vmatprep.subr.bf16.mxu0 0
    %391 = vmatpush1.bf16.msra.mxu0 0
    %392 = vmatprep.subr.bf16.mxu0 0
    %393 = vmatpush1.bf16.msra.mxu0 0
    %394 = vmatprep.mubr.bf16.mxu0 0
    %395 = vmatmul.mubr.bf16.gmra.mrb[0].mxu0 %v357
    %v396 = vpop.f32.mrb[0].mxu0
    %v397 = vadd.f32 0.0, %v396
    %v398 = vpop.f32.mrb[0].mxu0
    %v399 = vadd.f32 0.0, %v398
    %v400 = vpop.f32.mrb[0].mxu0
    %v401 = vadd.f32 0.0, %v400
    %v402 = vpop.f32.mrb[0].mxu0
    %v403 = vadd.f32 0.0, %v402
    %404 = vmatprep.mubr.bf16.mxu0 0
    %405 = vmatmul.mubr.bf16.gmra.mrb[0].mxu0 %v360
    %v406 = vpop.f32.mrb[0].mxu0
    %v407 = vadd.f32 0.0, %v406
    %v408 = vpop.f32.mrb[0].mxu0
    %v409 = vadd.f32 0.0, %v408
    %v410 = vpop.f32.mrb[0].mxu0
    %v411 = vadd.f32 0.0, %v410
    %v412 = vpop.f32.mrb[0].mxu0
    %v413 = vadd.f32 0.0, %v412
    %414 = vdwg.mxu0
    %v415 = vld [vmem:[%s8] sm:$0xf]
    %v416 = vld [vmem:[%s8 + $0x4] sm:$0xf]
    %v417 = vld [vmem:[%s8 + $0x8] sm:$0xf]
    %v418 = vld [vmem:[%s8 + $0xc] sm:$0xf]
    %v423 = vunpack.c.l.b16 %v415
    %v424 = vunpack.c.l.b16 %v416
    %v425 = vunpack.c.l.b16 %v417
    %v426 = vunpack.c.l.b16 %v418
    %v427 = vpack.c.b16 %v424, %v423
    %v428 = vpack.c.b16 %v426, %v425
    %v432 = vsel %vm132, %v223, 0
    %434 = vmatprep.subr.bf16.mxu0 0
    %435 = vmatpush1.bf16.msra.mxu0 %v427
    %436 = vmatprep.subr.bf16.mxu0 0
    %437 = vmatpush1.bf16.msra.mxu0 %v428
    %438 = vmatprep.subr.bf16.mxu0 0
    %439 = vmatpush1.bf16.msra.mxu0 0
    %440 = vmatprep.subr.bf16.mxu0 0
    %441 = vmatpush1.bf16.msra.mxu0 0
    %442 = vmatprep.subr.bf16.mxu0 0
    %443 = vmatpush1.bf16.msra.mxu0 0
    %444 = vmatprep.subr.bf16.mxu0 0
    %445 = vmatpush1.bf16.msra.mxu0 0
    %446 = vmatprep.subr.bf16.mxu0 0
    %447 = vmatpush1.bf16.msra.mxu0 0
    %448 = vmatprep.subr.bf16.mxu0 0
    %449 = vmatpush1.bf16.msra.mxu0 0
    %450 = vmatprep.subr.bf16.mxu0 0
    %451 = vmatpush1.bf16.msra.mxu0 0
    %452 = vmatprep.subr.bf16.mxu0 0
    %453 = vmatpush1.bf16.msra.mxu0 0
    %454 = vmatprep.subr.bf16.mxu0 0
    %455 = vmatpush1.bf16.msra.mxu0 0
    %456 = vmatprep.subr.bf16.mxu0 0
    %457 = vmatpush1.bf16.msra.mxu0 0
    %458 = vmatprep.subr.bf16.mxu0 0
    %459 = vmatpush1.bf16.msra.mxu0 0
    %460 = vmatprep.subr.bf16.mxu0 0
    %461 = vmatpush1.bf16.msra.mxu0 0
    %462 = vmatprep.subr.bf16.mxu0 0
    %463 = vmatpush1.bf16.msra.mxu0 0
    %464 = vmatprep.subr.bf16.mxu0 0
    %465 = vmatpush1.bf16.msra.mxu0 0
    %466 = vmatprep.mubr.bf16.mxu0 0
    %467 = vmatmul.mubr.bf16.gmra.mrb[0].mxu0 %v432
    %v468 = vpop.f32.mrb[0].mxu0
    %v469 = vadd.f32 0.0, %v468
    %v470 = vpop.f32.mrb[0].mxu0
    %v471 = vpop.f32.mrb[0].mxu0
    %v472 = vpop.f32.mrb[0].mxu0
    %473 = vdwg.mxu0
    %v474 = vld [vmem:[%s9] sm:$0xf]
    %v475 = vld [vmem:[%s9 + $0x4] sm:$0xf]
    %v476 = vld [vmem:[%s9 + $0x8] sm:$0xf]
    %v477 = vld [vmem:[%s9 + $0xc] sm:$0xf]
    %v482 = vunpack.c.l.b16 %v474
    %v483 = vunpack.c.l.b16 %v475
    %v484 = vunpack.c.l.b16 %v476
    %v485 = vunpack.c.l.b16 %v477
    %v486 = vpack.c.b16 %v483, %v482
    %v487 = vpack.c.b16 %v485, %v484
    %490 = vmatprep.subr.bf16.mxu0 0
    %491 = vmatpush1.bf16.msra.mxu0 %v486
    %492 = vmatprep.subr.bf16.mxu0 0
    %493 = vmatpush1.bf16.msra.mxu0 %v487
    %494 = vmatprep.subr.bf16.mxu0 0
    %495 = vmatpush1.bf16.msra.mxu0 0
    %496 = vmatprep.subr.bf16.mxu0 0
    %497 = vmatpush1.bf16.msra.mxu0 0
    %498 = vmatprep.subr.bf16.mxu0 0
    %499 = vmatpush1.bf16.msra.mxu0 0
    %500 = vmatprep.subr.bf16.mxu0 0
    %501 = vmatpush1.bf16.msra.mxu0 0
    %502 = vmatprep.subr.bf16.mxu0 0
    %503 = vmatpush1.bf16.msra.mxu0 0
    %504 = vmatprep.subr.bf16.mxu0 0
    %505 = vmatpush1.bf16.msra.mxu0 0
    %506 = vmatprep.subr.bf16.mxu0 0
    %507 = vmatpush1.bf16.msra.mxu0 0
    %508 = vmatprep.subr.bf16.mxu0 0
    %509 = vmatpush1.bf16.msra.mxu0 0
    %510 = vmatprep.subr.bf16.mxu0 0
    %511 = vmatpush1.bf16.msra.mxu0 0
    %512 = vmatprep.subr.bf16.mxu0 0
    %513 = vmatpush1.bf16.msra.mxu0 0
    %514 = vmatprep.subr.bf16.mxu0 0
    %515 = vmatpush1.bf16.msra.mxu0 0
    %516 = vmatprep.subr.bf16.mxu0 0
    %517 = vmatpush1.bf16.msra.mxu0 0
    %518 = vmatprep.subr.bf16.mxu0 0
    %519 = vmatpush1.bf16.msra.mxu0 0
    %520 = vmatprep.subr.bf16.mxu0 0
    %521 = vmatpush1.bf16.msra.mxu0 0
    %522 = vmatprep.mubr.bf16.mxu0 0
    %523 = vmatmul.mubr.bf16.gmra.mrb[0].mxu0 %v432
    %v524 = vpop.f32.mrb[0].mxu0
    %v525 = vadd.f32 0.0, %v524
    %v526 = vpop.f32.mrb[0].mxu0
    %v527 = vpop.f32.mrb[0].mxu0
    %v528 = vpop.f32.mrb[0].mxu0
    %529 = vdwg.mxu0
    %v530 = vpack.c.bf16 %v469, %v469
    %v531 = vpack.c.bf16 %v401, %v397
    %v532 = vpack.c.bf16 %v403, %v399
    %v533 = vpack.c.bf16 %v411, %v407
    %v534 = vpack.c.bf16 %v413, %v409
    %v536 = vsel %vm132, %v530, 0
    %538 = vmatprep.subr.bf16.mxu0 %v532
    %539 = vmatpush1.bf16.msra.mxu0 %v531
    %540 = vmatprep.subr.bf16.mxu0 %v534
    %541 = vmatpush1.bf16.msra.mxu0 %v533
    %542 = vmatprep.subr.bf16.mxu0 0
    %543 = vmatpush1.bf16.msra.mxu0 0
    %544 = vmatprep.subr.bf16.mxu0 0
    %545 = vmatpush1.bf16.msra.mxu0 0
    %546 = vmatprep.subr.bf16.mxu0 0
    %547 = vmatpush1.bf16.msra.mxu0 0
    %548 = vmatprep.subr.bf16.mxu0 0
    %549 = vmatpush1.bf16.msra.mxu0 0
    %550 = vmatprep.subr.bf16.mxu0 0
    %551 = vmatpush1.bf16.msra.mxu0 0
    %552 = vmatprep.subr.bf16.mxu0 0
    %553 = vmatpush1.bf16.msra.mxu0 0
    %554 = vmatprep.subr.bf16.mxu0 0
    %555 = vmatpush1.bf16.msra.mxu0 0
    %556 = vmatprep.subr.bf16.mxu0 0
    %557 = vmatpush1.bf16.msra.mxu0 0
    %558 = vmatprep.subr.bf16.mxu0 0
    %559 = vmatpush1.bf16.msra.mxu0 0
    %560 = vmatprep.subr.bf16.mxu0 0
    %561 = vmatpush1.bf16.msra.mxu0 0
    %562 = vmatprep.subr.bf16.mxu0 0
    %563 = vmatpush1.bf16.msra.mxu0 0
    %564 = vmatprep.subr.bf16.mxu0 0
    %565 = vmatpush1.bf16.msra.mxu0 0
    %566 = vmatprep.subr.bf16.mxu0 0
    %567 = vmatpush1.bf16.msra.mxu0 0
    %568 = vmatprep.subr.bf16.mxu0 0
    %569 = vmatpush1.bf16.msra.mxu0 0
    %570 = vmatprep.mubr.bf16.mxu0 0
    %571 = vmatmul.mubr.bf16.gmra.mrb[0].mxu0 %v536
    %v572 = vpop.f32.mrb[0].mxu0
    %v573 = vadd.f32 0.0, %v572
    %v574 = vpop.f32.mrb[0].mxu0
    %v575 = vadd.f32 0.0, %v574
    %v576 = vpop.f32.mrb[0].mxu0
    %v577 = vpop.f32.mrb[0].mxu0
    %578 = vdwg.mxu0
    %v579 = vmul.f32 %v573, 0.17677669
    %v580 = vmul.f32 %v575, 0.17677669
    %v581 = vrot.slane %v579, 4
    %v582 = vmax.f32 %v579, %v581
    %v583 = vrot.slane %v582, 2
    %v584 = vmax.f32 %v582, %v583
    %v585 = vrot.slane %v584, 1
    %v586 = vmax.f32 %v584, %v585
    %v587 = vrot.slane %v580, 4
    %v588 = vmax.f32 %v580, %v587
    %v589 = vrot.slane %v588, 2
    %v590 = vmax.f32 %v588, %v589
    %v591 = vrot.slane %v590, 1
    %v592 = vmax.f32 %v590, %v591
    %v593 = vsub.f32 %v579, %v586
    %v594 = vsub.f32 %v580, %v592
    %v595 = vmul.f32 %v593, 1.442695
    %v596 = vpow.pop %v595
    %v597 = vmul.f32 %v594, 1.442695
    %v598 = vpow.pop %v597
    %v599 = vrot.slane %v596, 4
    %v600 = vadd.f32 %v596, %v599
    %v601 = vrot.slane %v600, 2
    %v602 = vadd.f32 %v600, %v601
    %v603 = vrot.slane %v602, 1
    %v604 = vadd.f32 %v602, %v603
    %v605 = vrot.slane %v598, 4
    %v606 = vadd.f32 %v598, %v605
    %v607 = vrot.slane %v606, 2
    %v608 = vadd.f32 %v606, %v607
    %v609 = vrot.slane %v608, 1
    %v610 = vadd.f32 %v608, %v609
    %v611 = vrcp.pop %v604
    %v612 = vrcp.pop %v610
    %v613 = vmul.f32 %v596, %v611
    %v614 = vmul.f32 %v598, %v612
    %v615 = vpack.c.bf16 %v525, %v525
    %v616 = vpack.c.bf16 %v613, %v613
    %v617 = vpack.c.bf16 %v614, %v614
    %618 = vxpose.xlu0.c.b16.start [1/8] %v615, 128
    %619 = vxpose.xlu0.c.b16.cont [2/8] 0, 128
    %620 = vxpose.xlu0.c.b16.cont [3/8] 0, 128
    %621 = vxpose.xlu0.c.b16.cont [4/8] 0, 128
    %622 = vxpose.xlu0.c.b16.cont [5/8] 0, 128
    %623 = vxpose.xlu0.c.b16.cont [6/8] 0, 128
    %624 = vxpose.xlu0.c.b16.cont [7/8] 0, 128
    %625 = vxpose.xlu0.c.b16.end [8/8] 0, 128
    %v626 = vpop.trf.xlu0
    %v627 = vpop.trf.xlu0
    %v628 = vpop.trf.xlu0
    %v629 = vpop.trf.xlu0
    %v630 = vpop.trf.xlu0
    %v631 = vpop.trf.xlu0
    %v632 = vpop.trf.xlu0
    %v633 = vpop.trf.xlu0
    %vm634 = vcmask 64512
    %v636 = vsel %vm634, %v626, 0
    %v639 = vsel %vm634, %v627, 0
    %vm641 = vcmask 1043456
    %v643 = vsel %vm641, %v616, 0
    %v646 = vsel %vm641, %v617, 0
    %648 = vmatprep.subr.bf16.mxu0 %v646
    %649 = vmatpush1.bf16.msra.mxu0 %v643
    %650 = vmatprep.subr.bf16.mxu0 0
    %651 = vmatpush1.bf16.msra.mxu0 0
    %652 = vmatprep.subr.bf16.mxu0 0
    %653 = vmatpush1.bf16.msra.mxu0 0
    %654 = vmatprep.subr.bf16.mxu0 0
    %655 = vmatpush1.bf16.msra.mxu0 0
    %656 = vmatprep.subr.bf16.mxu0 0
    %657 = vmatpush1.bf16.msra.mxu0 0
    %658 = vmatprep.subr.bf16.mxu0 0
    %659 = vmatpush1.bf16.msra.mxu0 0
    %660 = vmatprep.subr.bf16.mxu0 0
    %661 = vmatpush1.bf16.msra.mxu0 0
    %662 = vmatprep.subr.bf16.mxu0 0
    %663 = vmatpush1.bf16.msra.mxu0 0
    %664 = vmatprep.subr.bf16.mxu0 0
    %665 = vmatpush1.bf16.msra.mxu0 0
    %666 = vmatprep.subr.bf16.mxu0 0
    %667 = vmatpush1.bf16.msra.mxu0 0
    %668 = vmatprep.subr.bf16.mxu0 0
    %669 = vmatpush1.bf16.msra.mxu0 0
    %670 = vmatprep.subr.bf16.mxu0 0
    %671 = vmatpush1.bf16.msra.mxu0 0
    %672 = vmatprep.subr.bf16.mxu0 0
    %673 = vmatpush1.bf16.msra.mxu0 0
    %674 = vmatprep.subr.bf16.mxu0 0
    %675 = vmatpush1.bf16.msra.mxu0 0
    %676 = vmatprep.subr.bf16.mxu0 0
    %677 = vmatpush1.bf16.msra.mxu0 0
    %678 = vmatprep.subr.bf16.mxu0 0
    %679 = vmatpush1.bf16.msra.mxu0 0
    %680 = vmatprep.mubr.bf16.mxu0 0
    %681 = vmatmul.mubr.bf16.gmra.mrb[0].mxu0 %v636
    %v682 = vpop.f32.mrb[0].mxu0
    %v683 = vadd.f32 0.0, %v682
    %v684 = vpop.f32.mrb[0].mxu0
    %v685 = vadd.f32 0.0, %v684
    %v686 = vpop.f32.mrb[0].mxu0
    %v687 = vadd.f32 0.0, %v686
    %v688 = vpop.f32.mrb[0].mxu0
    %v689 = vadd.f32 0.0, %v688
    %690 = vmatprep.mubr.bf16.mxu0 0
    %691 = vmatmul.mubr.bf16.gmra.mrb[0].mxu0 %v639
    %v692 = vpop.f32.mrb[0].mxu0
    %v693 = vadd.f32 0.0, %v692
    %v694 = vpop.f32.mrb[0].mxu0
    %v695 = vadd.f32 0.0, %v694
    %v696 = vpop.f32.mrb[0].mxu0
    %v697 = vadd.f32 0.0, %v696
    %v698 = vpop.f32.mrb[0].mxu0
    %v699 = vadd.f32 0.0, %v698
    %700 = vdwg.mxu0
    %v701 = vld [vmem:[%s10] sm:$0xf]
    %v702 = vld [vmem:[%s10 + $0x4] sm:$0xf]
    %v703 = vld [vmem:[%s10 + $0x8] sm:$0xf]
    %v704 = vld [vmem:[%s10 + $0xc] sm:$0xf]
    %v705 = vpack.c.bf16 %v687, %v683
    %v706 = vpack.c.bf16 %v689, %v685
    %v707 = vpack.c.bf16 %v697, %v693
    %v708 = vpack.c.bf16 %v699, %v695
    %v713 = vunpack.c.l.b16 %v701
    %v714 = vunpack.c.l.b16 %v702
    %v715 = vunpack.c.l.b16 %v703
    %v716 = vunpack.c.l.b16 %v704
    %v717 = vpack.c.b16 %v714, %v713
    %v718 = vpack.c.b16 %v716, %v715
    %v720 = vsel %vm132, %v717, 0
    %v723 = vsel %vm132, %v718, 0
    %725 = vmatprep.subr.bf16.mxu0 %v706
    %726 = vmatpush1.bf16.msra.mxu0 %v705
    %727 = vmatprep.subr.bf16.mxu0 %v708
    %728 = vmatpush1.bf16.msra.mxu0 %v707
    %729 = vmatprep.subr.bf16.mxu0 0
    %730 = vmatpush1.bf16.msra.mxu0 0
    %731 = vmatprep.subr.bf16.mxu0 0
    %732 = vmatpush1.bf16.msra.mxu0 0
    %733 = vmatprep.subr.bf16.mxu0 0
    %734 = vmatpush1.bf16.msra.mxu0 0
    %735 = vmatprep.subr.bf16.mxu0 0
    %736 = vmatpush1.bf16.msra.mxu0 0
    %737 = vmatprep.subr.bf16.mxu0 0
    %738 = vmatpush1.bf16.msra.mxu0 0
    %739 = vmatprep.subr.bf16.mxu0 0
    %740 = vmatpush1.bf16.msra.mxu0 0
    %741 = vmatprep.subr.bf16.mxu0 0
    %742 = vmatpush1.bf16.msra.mxu0 0
    %743 = vmatprep.subr.bf16.mxu0 0
    %744 = vmatpush1.bf16.msra.mxu0 0
    %745 = vmatprep.subr.bf16.mxu0 0
    %746 = vmatpush1.bf16.msra.mxu0 0
    %747 = vmatprep.subr.bf16.mxu0 0
    %748 = vmatpush1.bf16.msra.mxu0 0
    %749 = vmatprep.subr.bf16.mxu0 0
    %750 = vmatpush1.bf16.msra.mxu0 0
    %751 = vmatprep.subr.bf16.mxu0 0
    %752 = vmatpush1.bf16.msra.mxu0 0
    %753 = vmatprep.subr.bf16.mxu0 0
    %754 = vmatpush1.bf16.msra.mxu0 0
    %755 = vmatprep.subr.bf16.mxu0 0
    %756 = vmatpush1.bf16.msra.mxu0 0
    %757 = vmatprep.mubr.bf16.mxu0 0
    %758 = vmatmul.mubr.bf16.gmra.mrb[0].mxu0 %v720
    %v759 = vpop.f32.mrb[0].mxu0
    %v760 = vadd.f32 0.0, %v759
    %v761 = vpop.f32.mrb[0].mxu0
    %v762 = vadd.f32 0.0, %v761
    %v763 = vpop.f32.mrb[0].mxu0
    %v764 = vadd.f32 0.0, %v763
    %v765 = vpop.f32.mrb[0].mxu0
    %v766 = vadd.f32 0.0, %v765
    %767 = vmatprep.mubr.bf16.mxu0 0
    %768 = vmatmul.mubr.bf16.gmra.mrb[0].mxu0 %v723
    %v769 = vpop.f32.mrb[0].mxu0
    %v770 = vadd.f32 0.0, %v769
    %v771 = vpop.f32.mrb[0].mxu0
    %v772 = vadd.f32 0.0, %v771
    %v773 = vpop.f32.mrb[0].mxu0
    %v774 = vadd.f32 0.0, %v773
    %v775 = vpop.f32.mrb[0].mxu0
    %v776 = vadd.f32 0.0, %v775
    %777 = vdwg.mxu0
    %v778 = vadd.f32 %v320, %v760
    %v779 = vadd.f32 %v322, %v762
    %v780 = vadd.f32 %v324, %v764
    %v781 = vadd.f32 %v326, %v766
    %v782 = vadd.f32 %v330, %v770
    %v783 = vadd.f32 %v332, %v772
    %v784 = vadd.f32 %v334, %v774
    %v785 = vadd.f32 %v336, %v776
    %v786 = vld [vmem:[%s11] sm:$0x3]
    %v787 = vpack.c.bf16 %v780, %v778
    %v788 = vpack.c.bf16 %v781, %v779
    %v789 = vpack.c.bf16 %v784, %v782
    %v790 = vpack.c.bf16 %v785, %v783
    %792 = vset.pattern.permute.xlu0 0
    %793 = vperm.xlu0 %792, %v221
    %v794 = vpop.permute.xlu0 %793
    %v797 = vunpack.c.l.s4 839922192
    %v798 = vunpack.c.0.s8 %v797
    %v799 = vlaneseq
    %v800 = vshrl.u32 %v799, 7
    %v801 = vsub.s32 %v798, %v800
    %v802 = vrot.slane %v794, %v801
    %v804 = vcombine.high %v802, %v802
    %v807 = vsel %vm132, %v786, 0
    %809 = vmatprep.subr.bf16.mxu0 %v788
    %810 = vmatpush1.bf16.msra.mxu0 %v787
    %811 = vmatprep.subr.bf16.mxu0 %v790
    %812 = vmatpush1.bf16.msra.mxu0 %v789
    %813 = vmatprep.subr.bf16.mxu0 0
    %814 = vmatpush1.bf16.msra.mxu0 0
    %815 = vmatprep.subr.bf16.mxu0 0
    %816 = vmatpush1.bf16.msra.mxu0 0
    %817 = vmatprep.subr.bf16.mxu0 0
    %818 = vmatpush1.bf16.msra.mxu0 0
    %819 = vmatprep.subr.bf16.mxu0 0
    %820 = vmatpush1.bf16.msra.mxu0 0
    %821 = vmatprep.subr.bf16.mxu0 0
    %822 = vmatpush1.bf16.msra.mxu0 0
    %823 = vmatprep.subr.bf16.mxu0 0
    %824 = vmatpush1.bf16.msra.mxu0 0
    %825 = vmatprep.subr.bf16.mxu0 0
    %826 = vmatpush1.bf16.msra.mxu0 0
    %827 = vmatprep.subr.bf16.mxu0 0
    %828 = vmatpush1.bf16.msra.mxu0 0
    %829 = vmatprep.subr.bf16.mxu0 0
    %830 = vmatpush1.bf16.msra.mxu0 0
    %831 = vmatprep.subr.bf16.mxu0 0
    %832 = vmatpush1.bf16.msra.mxu0 0
    %833 = vmatprep.subr.bf16.mxu0 0
    %834 = vmatpush1.bf16.msra.mxu0 0
    %835 = vmatprep.subr.bf16.mxu0 0
    %836 = vmatpush1.bf16.msra.mxu0 0
    %837 = vmatprep.subr.bf16.mxu0 0
    %838 = vmatpush1.bf16.msra.mxu0 0
    %839 = vmatprep.subr.bf16.mxu0 0
    %840 = vmatpush1.bf16.msra.mxu0 0
    %841 = vmatprep.mubr.bf16.mxu0 0
    %842 = vmatmul.mubr.bf16.gmra.mrb[0].mxu0 %v807
    %v843 = vpop.f32.mrb[0].mxu0
    %v844 = vadd.f32 %v802, %v843
    %v845 = vpop.f32.mrb[0].mxu0
    %v846 = vadd.f32 %v804, %v845
    %v847 = vpop.f32.mrb[0].mxu0
    %v848 = vpop.f32.mrb[0].mxu0
    %849 = vdwg.mxu0
    %v852 = vcombine.low %v844, %v846
    %854 = vst [vmem:[#allocation7] sm:$0xff] %v852
    %s855 = scalar_lea.vmem [#allocation2], 4
    %v856 = vld [vmem:[%s855] sm:$0xf]
    %s857 = scalar_lea.vmem [#allocation5], 4
    %v858 = vld [vmem:[%s857] sm:$0xf]
    %863 = vrot.lane.b32.xlu0 %v208, 127
    %v864 = vpop.permute.xlu0 %863
    %865 = vrot.lane.b32.xlu0 %v209, 127
    %v866 = vpop.permute.xlu0 %865
    %867 = vrot.lane.b32.xlu0 %v210, 127
    %v868 = vpop.permute.xlu0 %867
    %869 = vrot.lane.b32.xlu0 %v211, 127
    %v870 = vpop.permute.xlu0 %869
    %v875 = vadd.f32 %v216, %v864
    %v876 = vadd.f32 %v217, %v866
    %v877 = vadd.f32 %v218, %v868
    %v878 = vadd.f32 %v219, %v870
    %v879 = vld [vmem:[%s5] sm:$0xf]
    %v880 = vld [vmem:[%s5 + $0x4] sm:$0xf]
    %v881 = vld [vmem:[%s5 + $0x8] sm:$0xf]
    %v882 = vld [vmem:[%s5 + $0xc] sm:$0xf]
    %884 = vset.pattern.permute.xlu0 0
    %885 = vperm.xlu0 %884, %v875
    %v886 = vpop.permute.xlu0 %885
    %889 = vset.pattern.permute.xlu0 0
    %890 = vperm.xlu0 %889, %v876
    %v891 = vpop.permute.xlu0 %890
    %894 = vset.pattern.permute.xlu0 0
    %895 = vperm.xlu0 %894, %v877
    %v896 = vpop.permute.xlu0 %895
    %899 = vset.pattern.permute.xlu0 0
    %900 = vperm.xlu0 %899, %v878
    %v901 = vpop.permute.xlu0 %900
    %v907 = vunpack.c.l.b16 %v879
    %v908 = vunpack.c.l.b16 %v880
    %v909 = vunpack.c.l.b16 %v881
    %v910 = vunpack.c.l.b16 %v882
    %v911 = vpack.c.b16 %v908, %v907
    %v912 = vpack.c.b16 %v910, %v909
    %v915 = vunpack.c.l.s4 1983009808
    %v916 = vunpack.c.0.s8 %v915
    %v917 = vlaneseq
    %v918 = vshrl.u32 %v917, 7
    %v919 = vsub.s32 %v916, %v918
    %v920 = vrot.slane %v856, %v919
    %v921 = vcombine.high %v920, %v920
    %v923 = vsel %vm271, %v911, 0
    %v926 = vsel %vm271, %v912, 0
    %v929 = vsel %vm278, %v920, 0
    %v932 = vsel %vm278, %v921, 0
    %934 = vmatprep.subr.bf16.mxu0 %v932
    %935 = vmatpush1.bf16.msra.mxu0 %v929
    %936 = vmatprep.subr.bf16.mxu0 0
    %937 = vmatpush1.bf16.msra.mxu0 0
    %938 = vmatprep.subr.bf16.mxu0 0
    %939 = vmatpush1.bf16.msra.mxu0 0
    %940 = vmatprep.subr.bf16.mxu0 0
    %941 = vmatpush1.bf16.msra.mxu0 0
    %942 = vmatprep.subr.bf16.mxu0 0
    %943 = vmatpush1.bf16.msra.mxu0 0
    %944 = vmatprep.subr.bf16.mxu0 0
    %945 = vmatpush1.bf16.msra.mxu0 0
    %946 = vmatprep.subr.bf16.mxu0 0
    %947 = vmatpush1.bf16.msra.mxu0 0
    %948 = vmatprep.subr.bf16.mxu0 0
    %949 = vmatpush1.bf16.msra.mxu0 0
    %950 = vmatprep.subr.bf16.mxu0 0
    %951 = vmatpush1.bf16.msra.mxu0 0
    %952 = vmatprep.subr.bf16.mxu0 0
    %953 = vmatpush1.bf16.msra.mxu0 0
    %954 = vmatprep.subr.bf16.mxu0 0
    %955 = vmatpush1.bf16.msra.mxu0 0
    %956 = vmatprep.subr.bf16.mxu0 0
    %957 = vmatpush1.bf16.msra.mxu0 0
    %958 = vmatprep.subr.bf16.mxu0 0
    %959 = vmatpush1.bf16.msra.mxu0 0
    %960 = vmatprep.subr.bf16.mxu0 0
    %961 = vmatpush1.bf16.msra.mxu0 0
    %962 = vmatprep.subr.bf16.mxu0 0
    %963 = vmatpush1.bf16.msra.mxu0 0
    %964 = vmatprep.subr.bf16.mxu0 0
    %965 = vmatpush1.bf16.msra.mxu0 0
    %966 = vmatprep.mubr.bf16.mxu0 0
    %967 = vmatmul.mubr.bf16.gmra.mrb[0].mxu0 %v923
    %v968 = vpop.f32.mrb[0].mxu0
    %v969 = vadd.f32 %v886, %v968
    %v970 = vpop.f32.mrb[0].mxu0
    %v971 = vadd.f32 %v886, %v970
    %v972 = vpop.f32.mrb[0].mxu0
    %v973 = vadd.f32 %v891, %v972
    %v974 = vpop.f32.mrb[0].mxu0
    %v975 = vadd.f32 %v891, %v974
    %976 = vmatprep.mubr.bf16.mxu0 0
    %977 = vmatmul.mubr.bf16.gmra.mrb[0].mxu0 %v926
    %v978 = vpop.f32.mrb[0].mxu0
    %v979 = vadd.f32 %v896, %v978
    %v980 = vpop.f32.mrb[0].mxu0
    %v981 = vadd.f32 %v896, %v980
    %v982 = vpop.f32.mrb[0].mxu0
    %v983 = vadd.f32 %v901, %v982
    %v984 = vpop.f32.mrb[0].mxu0
    %v985 = vadd.f32 %v901, %v984
    %986 = vdwg.mxu0
    %v987 = vpack.c.bf16 %v973, %v969
    %v988 = vpack.c.bf16 %v975, %v971
    %v989 = vpack.c.bf16 %v983, %v979
    %v990 = vpack.c.bf16 %v985, %v981
    %v991 = vld [vmem:[%s7] sm:$0xf]
    %v992 = vld [vmem:[%s7 + $0x4] sm:$0xf]
    %v993 = vld [vmem:[%s7 + $0x8] sm:$0xf]
    %v994 = vld [vmem:[%s7 + $0xc] sm:$0xf]
    %v999 = vunpack.c.l.b16 %v991
    %v1000 = vunpack.c.l.b16 %v992
    %v1001 = vunpack.c.l.b16 %v993
    %v1002 = vunpack.c.l.b16 %v994
    %v1003 = vpack.c.b16 %v1000, %v999
    %v1004 = vpack.c.b16 %v1002, %v1001
    %v1006 = vsel %vm132, %v1003, 0
    %v1009 = vsel %vm132, %v1004, 0
    %1011 = vmatprep.subr.bf16.mxu0 %v988
    %1012 = vmatpush1.bf16.msra.mxu0 %v987
    %1013 = vmatprep.subr.bf16.mxu0 %v990
    %1014 = vmatpush1.bf16.msra.mxu0 %v989
    %1015 = vmatprep.subr.bf16.mxu0 0
    %1016 = vmatpush1.bf16.msra.mxu0 0
    %1017 = vmatprep.subr.bf16.mxu0 0
    %1018 = vmatpush1.bf16.msra.mxu0 0
    %1019 = vmatprep.subr.bf16.mxu0 0
    %1020 = vmatpush1.bf16.msra.mxu0 0
    %1021 = vmatprep.subr.bf16.mxu0 0
    %1022 = vmatpush1.bf16.msra.mxu0 0
    %1023 = vmatprep.subr.bf16.mxu0 0
    %1024 = vmatpush1.bf16.msra.mxu0 0
    %1025 = vmatprep.subr.bf16.mxu0 0
    %1026 = vmatpush1.bf16.msra.mxu0 0
    %1027 = vmatprep.subr.bf16.mxu0 0
    %1028 = vmatpush1.bf16.msra.mxu0 0
    %1029 = vmatprep.subr.bf16.mxu0 0
    %1030 = vmatpush1.bf16.msra.mxu0 0
    %1031 = vmatprep.subr.bf16.mxu0 0
    %1032 = vmatpush1.bf16.msra.mxu0 0
    %1033 = vmatprep.subr.bf16.mxu0 0
    %1034 = vmatpush1.bf16.msra.mxu0 0
    %1035 = vmatprep.subr.bf16.mxu0 0
    %1036 = vmatpush1.bf16.msra.mxu0 0
    %1037 = vmatprep.subr.bf16.mxu0 0
    %1038 = vmatpush1.bf16.msra.mxu0 0
    %1039 = vmatprep.subr.bf16.mxu0 0
    %1040 = vmatpush1.bf16.msra.mxu0 0
    %1041 = vmatprep.subr.bf16.mxu0 0
    %1042 = vmatpush1.bf16.msra.mxu0 0
    %1043 = vmatprep.mubr.bf16.mxu0 0
    %1044 = vmatmul.mubr.bf16.gmra.mrb[0].mxu0 %v1006
    %v1045 = vpop.f32.mrb[0].mxu0
    %v1046 = vadd.f32 0.0, %v1045
    %v1047 = vpop.f32.mrb[0].mxu0
    %v1048 = vadd.f32 0.0, %v1047
    %v1049 = vpop.f32.mrb[0].mxu0
    %v1050 = vadd.f32 0.0, %v1049
    %v1051 = vpop.f32.mrb[0].mxu0
    %v1052 = vadd.f32 0.0, %v1051
    %1053 = vmatprep.mubr.bf16.mxu0 0
    %1054 = vmatmul.mubr.bf16.gmra.mrb[0].mxu0 %v1009
    %v1055 = vpop.f32.mrb[0].mxu0
    %v1056 = vadd.f32 0.0, %v1055
    %v1057 = vpop.f32.mrb[0].mxu0
    %v1058 = vadd.f32 0.0, %v1057
    %v1059 = vpop.f32.mrb[0].mxu0
    %v1060 = vadd.f32 0.0, %v1059
    %v1061 = vpop.f32.mrb[0].mxu0
    %v1062 = vadd.f32 0.0, %v1061
    %1063 = vdwg.mxu0
    %v1064 = vld [vmem:[%s8] sm:$0xf]
    %v1065 = vld [vmem:[%s8 + $0x4] sm:$0xf]
    %v1066 = vld [vmem:[%s8 + $0x8] sm:$0xf]
    %v1067 = vld [vmem:[%s8 + $0xc] sm:$0xf]
    %v1072 = vunpack.c.l.b16 %v1064
    %v1073 = vunpack.c.l.b16 %v1065
    %v1074 = vunpack.c.l.b16 %v1066
    %v1075 = vunpack.c.l.b16 %v1067
    %v1076 = vpack.c.b16 %v1073, %v1072
    %v1077 = vpack.c.b16 %v1075, %v1074
    %v1081 = vsel %vm132, %v858, 0
    %1083 = vmatprep.subr.bf16.mxu0 0
    %1084 = vmatpush1.bf16.msra.mxu0 %v1076
    %1085 = vmatprep.subr.bf16.mxu0 0
    %1086 = vmatpush1.bf16.msra.mxu0 %v1077
    %1087 = vmatprep.subr.bf16.mxu0 0
    %1088 = vmatpush1.bf16.msra.mxu0 0
    %1089 = vmatprep.subr.bf16.mxu0 0
    %1090 = vmatpush1.bf16.msra.mxu0 0
    %1091 = vmatprep.subr.bf16.mxu0 0
    %1092 = vmatpush1.bf16.msra.mxu0 0
    %1093 = vmatprep.subr.bf16.mxu0 0
    %1094 = vmatpush1.bf16.msra.mxu0 0
    %1095 = vmatprep.subr.bf16.mxu0 0
    %1096 = vmatpush1.bf16.msra.mxu0 0
    %1097 = vmatprep.subr.bf16.mxu0 0
    %1098 = vmatpush1.bf16.msra.mxu0 0
    %1099 = vmatprep.subr.bf16.mxu0 0
    %1100 = vmatpush1.bf16.msra.mxu0 0
    %1101 = vmatprep.subr.bf16.mxu0 0
    %1102 = vmatpush1.bf16.msra.mxu0 0
    %1103 = vmatprep.subr.bf16.mxu0 0
    %1104 = vmatpush1.bf16.msra.mxu0 0
    %1105 = vmatprep.subr.bf16.mxu0 0
    %1106 = vmatpush1.bf16.msra.mxu0 0
    %1107 = vmatprep.subr.bf16.mxu0 0
    %1108 = vmatpush1.bf16.msra.mxu0 0
    %1109 = vmatprep.subr.bf16.mxu0 0
    %1110 = vmatpush1.bf16.msra.mxu0 0
    %1111 = vmatprep.subr.bf16.mxu0 0
    %1112 = vmatpush1.bf16.msra.mxu0 0
    %1113 = vmatprep.subr.bf16.mxu0 0
    %1114 = vmatpush1.bf16.msra.mxu0 0
    %1115 = vmatprep.mubr.bf16.mxu0 0
    %1116 = vmatmul.mubr.bf16.gmra.mrb[0].mxu0 %v1081
    %v1117 = vpop.f32.mrb[0].mxu0
    %v1118 = vadd.f32 0.0, %v1117
    %v1119 = vpop.f32.mrb[0].mxu0
    %v1120 = vpop.f32.mrb[0].mxu0
    %v1121 = vpop.f32.mrb[0].mxu0
    %1122 = vdwg.mxu0
    %v1123 = vld [vmem:[%s9] sm:$0xf]
    %v1124 = vld [vmem:[%s9 + $0x4] sm:$0xf]
    %v1125 = vld [vmem:[%s9 + $0x8] sm:$0xf]
    %v1126 = vld [vmem:[%s9 + $0xc] sm:$0xf]
    %v1131 = vunpack.c.l.b16 %v1123
    %v1132 = vunpack.c.l.b16 %v1124
    %v1133 = vunpack.c.l.b16 %v1125
    %v1134 = vunpack.c.l.b16 %v1126
    %v1135 = vpack.c.b16 %v1132, %v1131
    %v1136 = vpack.c.b16 %v1134, %v1133
    %1139 = vmatprep.subr.bf16.mxu0 0
    %1140 = vmatpush1.bf16.msra.mxu0 %v1135
    %1141 = vmatprep.subr.bf16.mxu0 0
    %1142 = vmatpush1.bf16.msra.mxu0 %v1136
    %1143 = vmatprep.subr.bf16.mxu0 0
    %1144 = vmatpush1.bf16.msra.mxu0 0
    %1145 = vmatprep.subr.bf16.mxu0 0
    %1146 = vmatpush1.bf16.msra.mxu0 0
    %1147 = vmatprep.subr.bf16.mxu0 0
    %1148 = vmatpush1.bf16.msra.mxu0 0
    %1149 = vmatprep.subr.bf16.mxu0 0
    %1150 = vmatpush1.bf16.msra.mxu0 0
    %1151 = vmatprep.subr.bf16.mxu0 0
    %1152 = vmatpush1.bf16.msra.mxu0 0
    %1153 = vmatprep.subr.bf16.mxu0 0
    %1154 = vmatpush1.bf16.msra.mxu0 0
    %1155 = vmatprep.subr.bf16.mxu0 0
    %1156 = vmatpush1.bf16.msra.mxu0 0
    %1157 = vmatprep.subr.bf16.mxu0 0
    %1158 = vmatpush1.bf16.msra.mxu0 0
    %1159 = vmatprep.subr.bf16.mxu0 0
    %1160 = vmatpush1.bf16.msra.mxu0 0
    %1161 = vmatprep.subr.bf16.mxu0 0
    %1162 = vmatpush1.bf16.msra.mxu0 0
    %1163 = vmatprep.subr.bf16.mxu0 0
    %1164 = vmatpush1.bf16.msra.mxu0 0
    %1165 = vmatprep.subr.bf16.mxu0 0
    %1166 = vmatpush1.bf16.msra.mxu0 0
    %1167 = vmatprep.subr.bf16.mxu0 0
    %1168 = vmatpush1.bf16.msra.mxu0 0
    %1169 = vmatprep.subr.bf16.mxu0 0
    %1170 = vmatpush1.bf16.msra.mxu0 0
    %1171 = vmatprep.mubr.bf16.mxu0 0
    %1172 = vmatmul.mubr.bf16.gmra.mrb[0].mxu0 %v1081
    %v1173 = vpop.f32.mrb[0].mxu0
    %v1174 = vadd.f32 0.0, %v1173
    %v1175 = vpop.f32.mrb[0].mxu0
    %v1176 = vpop.f32.mrb[0].mxu0
    %v1177 = vpop.f32.mrb[0].mxu0
    %1178 = vdwg.mxu0
    %v1179 = vpack.c.bf16 %v1118, %v1118
    %v1180 = vpack.c.bf16 %v1050, %v1046
    %v1181 = vpack.c.bf16 %v1052, %v1048
    %v1182 = vpack.c.bf16 %v1060, %v1056
    %v1183 = vpack.c.bf16 %v1062, %v1058
    %v1185 = vsel %vm132, %v1179, 0
    %1187 = vmatprep.subr.bf16.mxu0 %v1181
    %1188 = vmatpush1.bf16.msra.mxu0 %v1180
    %1189 = vmatprep.subr.bf16.mxu0 %v1183
    %1190 = vmatpush1.bf16.msra.mxu0 %v1182
    %1191 = vmatprep.subr.bf16.mxu0 0
    %1192 = vmatpush1.bf16.msra.mxu0 0
    %1193 = vmatprep.subr.bf16.mxu0 0
    %1194 = vmatpush1.bf16.msra.mxu0 0
    %1195 = vmatprep.subr.bf16.mxu0 0
    %1196 = vmatpush1.bf16.msra.mxu0 0
    %1197 = vmatprep.subr.bf16.mxu0 0
    %1198 = vmatpush1.bf16.msra.mxu0 0
    %1199 = vmatprep.subr.bf16.mxu0 0
    %1200 = vmatpush1.bf16.msra.mxu0 0
    %1201 = vmatprep.subr.bf16.mxu0 0
    %1202 = vmatpush1.bf16.msra.mxu0 0
    %1203 = vmatprep.subr.bf16.mxu0 0
    %1204 = vmatpush1.bf16.msra.mxu0 0
    %1205 = vmatprep.subr.bf16.mxu0 0
    %1206 = vmatpush1.bf16.msra.mxu0 0
    %1207 = vmatprep.subr.bf16.mxu0 0
    %1208 = vmatpush1.bf16.msra.mxu0 0
    %1209 = vmatprep.subr.bf16.mxu0 0
    %1210 = vmatpush1.bf16.msra.mxu0 0
    %1211 = vmatprep.subr.bf16.mxu0 0
    %1212 = vmatpush1.bf16.msra.mxu0 0
    %1213 = vmatprep.subr.bf16.mxu0 0
    %1214 = vmatpush1.bf16.msra.mxu0 0
    %1215 = vmatprep.subr.bf16.mxu0 0
    %1216 = vmatpush1.bf16.msra.mxu0 0
    %1217 = vmatprep.subr.bf16.mxu0 0
    %1218 = vmatpush1.bf16.msra.mxu0 0
    %1219 = vmatprep.mubr.bf16.mxu0 0
    %1220 = vmatmul.mubr.bf16.gmra.mrb[0].mxu0 %v1185
    %v1221 = vpop.f32.mrb[0].mxu0
    %v1222 = vadd.f32 0.0, %v1221
    %v1223 = vpop.f32.mrb[0].mxu0
    %v1224 = vadd.f32 0.0, %v1223
    %v1225 = vpop.f32.mrb[0].mxu0
    %v1226 = vpop.f32.mrb[0].mxu0
    %1227 = vdwg.mxu0
    %v1228 = vmul.f32 %v1222, 0.17677669
    %v1229 = vmul.f32 %v1224, 0.17677669
    %v1230 = vrot.slane %v1228, 4
    %v1231 = vmax.f32 %v1228, %v1230
    %v1232 = vrot.slane %v1231, 2
    %v1233 = vmax.f32 %v1231, %v1232
    %v1234 = vrot.slane %v1233, 1
    %v1235 = vmax.f32 %v1233, %v1234
    %v1236 = vrot.slane %v1229, 4
    %v1237 = vmax.f32 %v1229, %v1236
    %v1238 = vrot.slane %v1237, 2
    %v1239 = vmax.f32 %v1237, %v1238
    %v1240 = vrot.slane %v1239, 1
    %v1241 = vmax.f32 %v1239, %v1240
    %v1242 = vsub.f32 %v1228, %v1235
    %v1243 = vsub.f32 %v1229, %v1241
    %v1244 = vmul.f32 %v1242, 1.442695
    %v1245 = vpow.pop %v1244
    %v1246 = vmul.f32 %v1243, 1.442695
    %v1247 = vpow.pop %v1246
    %v1248 = vrot.slane %v1245, 4
    %v1249 = vadd.f32 %v1245, %v1248
    %v1250 = vrot.slane %v1249, 2
    %v1251 = vadd.f32 %v1249, %v1250
    %v1252 = vrot.slane %v1251, 1
    %v1253 = vadd.f32 %v1251, %v1252
    %v1254 = vrot.slane %v1247, 4
    %v1255 = vadd.f32 %v1247, %v1254
    %v1256 = vrot.slane %v1255, 2
    %v1257 = vadd.f32 %v1255, %v1256
    %v1258 = vrot.slane %v1257, 1
    %v1259 = vadd.f32 %v1257, %v1258
    %v1260 = vrcp.pop %v1253
    %v1261 = vrcp.pop %v1259
    %v1262 = vmul.f32 %v1245, %v1260
    %v1263 = vmul.f32 %v1247, %v1261
    %v1264 = vpack.c.bf16 %v1174, %v1174
    %v1265 = vpack.c.bf16 %v1262, %v1262
    %v1266 = vpack.c.bf16 %v1263, %v1263
    %1267 = vxpose.xlu0.c.b16.start [1/8] %v1264, 128
    %1268 = vxpose.xlu0.c.b16.cont [2/8] 0, 128
    %1269 = vxpose.xlu0.c.b16.cont [3/8] 0, 128
    %1270 = vxpose.xlu0.c.b16.cont [4/8] 0, 128
    %1271 = vxpose.xlu0.c.b16.cont [5/8] 0, 128
    %1272 = vxpose.xlu0.c.b16.cont [6/8] 0, 128
    %1273 = vxpose.xlu0.c.b16.cont [7/8] 0, 128
    %1274 = vxpose.xlu0.c.b16.end [8/8] 0, 128
    %v1275 = vpop.trf.xlu0
    %v1276 = vpop.trf.xlu0
    %v1277 = vpop.trf.xlu0
    %v1278 = vpop.trf.xlu0
    %v1279 = vpop.trf.xlu0
    %v1280 = vpop.trf.xlu0
    %v1281 = vpop.trf.xlu0
    %v1282 = vpop.trf.xlu0
    %v1284 = vsel %vm634, %v1275, 0
    %v1287 = vsel %vm634, %v1276, 0
    %v1290 = vsel %vm641, %v1265, 0
    %v1293 = vsel %vm641, %v1266, 0
    %1295 = vmatprep.subr.bf16.mxu0 %v1293
    %1296 = vmatpush1.bf16.msra.mxu0 %v1290
    %1297 = vmatprep.subr.bf16.mxu0 0
    %1298 = vmatpush1.bf16.msra.mxu0 0
    %1299 = vmatprep.subr.bf16.mxu0 0
    %1300 = vmatpush1.bf16.msra.mxu0 0
    %1301 = vmatprep.subr.bf16.mxu0 0
    %1302 = vmatpush1.bf16.msra.mxu0 0
    %1303 = vmatprep.subr.bf16.mxu0 0
    %1304 = vmatpush1.bf16.msra.mxu0 0
    %1305 = vmatprep.subr.bf16.mxu0 0
    %1306 = vmatpush1.bf16.msra.mxu0 0
    %1307 = vmatprep.subr.bf16.mxu0 0
    %1308 = vmatpush1.bf16.msra.mxu0 0
    %1309 = vmatprep.subr.bf16.mxu0 0
    %1310 = vmatpush1.bf16.msra.mxu0 0
    %1311 = vmatprep.subr.bf16.mxu0 0
    %1312 = vmatpush1.bf16.msra.mxu0 0
    %1313 = vmatprep.subr.bf16.mxu0 0
    %1314 = vmatpush1.bf16.msra.mxu0 0
    %1315 = vmatprep.subr.bf16.mxu0 0
    %1316 = vmatpush1.bf16.msra.mxu0 0
    %1317 = vmatprep.subr.bf16.mxu0 0
    %1318 = vmatpush1.bf16.msra.mxu0 0
    %1319 = vmatprep.subr.bf16.mxu0 0
    %1320 = vmatpush1.bf16.msra.mxu0 0
    %1321 = vmatprep.subr.bf16.mxu0 0
    %1322 = vmatpush1.bf16.msra.mxu0 0
    %1323 = vmatprep.subr.bf16.mxu0 0
    %1324 = vmatpush1.bf16.msra.mxu0 0
    %1325 = vmatprep.subr.bf16.mxu0 0
    %1326 = vmatpush1.bf16.msra.mxu0 0
    %1327 = vmatprep.mubr.bf16.mxu0 0
    %1328 = vmatmul.mubr.bf16.gmra.mrb[0].mxu0 %v1284
    %v1329 = vpop.f32.mrb[0].mxu0
    %v1330 = vadd.f32 0.0, %v1329
    %v1331 = vpop.f32.mrb[0].mxu0
    %v1332 = vadd.f32 0.0, %v1331
    %v1333 = vpop.f32.mrb[0].mxu0
    %v1334 = vadd.f32 0.0, %v1333
    %v1335 = vpop.f32.mrb[0].mxu0
    %v1336 = vadd.f32 0.0, %v1335
    %1337 = vmatprep.mubr.bf16.mxu0 0
    %1338 = vmatmul.mubr.bf16.gmra.mrb[0].mxu0 %v1287
    %v1339 = vpop.f32.mrb[0].mxu0
    %v1340 = vadd.f32 0.0, %v1339
    %v1341 = vpop.f32.mrb[0].mxu0
    %v1342 = vadd.f32 0.0, %v1341
    %v1343 = vpop.f32.mrb[0].mxu0
    %v1344 = vadd.f32 0.0, %v1343
    %v1345 = vpop.f32.mrb[0].mxu0
    %v1346 = vadd.f32 0.0, %v1345
    %1347 = vdwg.mxu0
    %v1348 = vld [vmem:[%s10] sm:$0xf]
    %v1349 = vld [vmem:[%s10 + $0x4] sm:$0xf]
    %v1350 = vld [vmem:[%s10 + $0x8] sm:$0xf]
    %v1351 = vld [vmem:[%s10 + $0xc] sm:$0xf]
    %v1352 = vpack.c.bf16 %v1334, %v1330
    %v1353 = vpack.c.bf16 %v1336, %v1332
    %v1354 = vpack.c.bf16 %v1344, %v1340
    %v1355 = vpack.c.bf16 %v1346, %v1342
    %v1360 = vunpack.c.l.b16 %v1348
    %v1361 = vunpack.c.l.b16 %v1349
    %v1362 = vunpack.c.l.b16 %v1350
    %v1363 = vunpack.c.l.b16 %v1351
    %v1364 = vpack.c.b16 %v1361, %v1360
    %v1365 = vpack.c.b16 %v1363, %v1362
    %v1367 = vsel %vm132, %v1364, 0
    %v1370 = vsel %vm132, %v1365, 0
    %1372 = vmatprep.subr.bf16.mxu0 %v1353
    %1373 = vmatpush1.bf16.msra.mxu0 %v1352
    %1374 = vmatprep.subr.bf16.mxu0 %v1355
    %1375 = vmatpush1.bf16.msra.mxu0 %v1354
    %1376 = vmatprep.subr.bf16.mxu0 0
    %1377 = vmatpush1.bf16.msra.mxu0 0
    %1378 = vmatprep.subr.bf16.mxu0 0
    %1379 = vmatpush1.bf16.msra.mxu0 0
    %1380 = vmatprep.subr.bf16.mxu0 0
    %1381 = vmatpush1.bf16.msra.mxu0 0
    %1382 = vmatprep.subr.bf16.mxu0 0
    %1383 = vmatpush1.bf16.msra.mxu0 0
    %1384 = vmatprep.subr.bf16.mxu0 0
    %1385 = vmatpush1.bf16.msra.mxu0 0
    %1386 = vmatprep.subr.bf16.mxu0 0
    %1387 = vmatpush1.bf16.msra.mxu0 0
    %1388 = vmatprep.subr.bf16.mxu0 0
    %1389 = vmatpush1.bf16.msra.mxu0 0
    %1390 = vmatprep.subr.bf16.mxu0 0
    %1391 = vmatpush1.bf16.msra.mxu0 0
    %1392 = vmatprep.subr.bf16.mxu0 0
    %1393 = vmatpush1.bf16.msra.mxu0 0
    %1394 = vmatprep.subr.bf16.mxu0 0
    %1395 = vmatpush1.bf16.msra.mxu0 0
    %1396 = vmatprep.subr.bf16.mxu0 0
    %1397 = vmatpush1.bf16.msra.mxu0 0
    %1398 = vmatprep.subr.bf16.mxu0 0
    %1399 = vmatpush1.bf16.msra.mxu0 0
    %1400 = vmatprep.subr.bf16.mxu0 0
    %1401 = vmatpush1.bf16.msra.mxu0 0
    %1402 = vmatprep.subr.bf16.mxu0 0
    %1403 = vmatpush1.bf16.msra.mxu0 0
    %1404 = vmatprep.mubr.bf16.mxu0 0
    %1405 = vmatmul.mubr.bf16.gmra.mrb[0].mxu0 %v1367
    %v1406 = vpop.f32.mrb[0].mxu0
    %v1407 = vadd.f32 0.0, %v1406
    %v1408 = vpop.f32.mrb[0].mxu0
    %v1409 = vadd.f32 0.0, %v1408
    %v1410 = vpop.f32.mrb[0].mxu0
    %v1411 = vadd.f32 0.0, %v1410
    %v1412 = vpop.f32.mrb[0].mxu0
    %v1413 = vadd.f32 0.0, %v1412
    %1414 = vmatprep.mubr.bf16.mxu0 0
    %1415 = vmatmul.mubr.bf16.gmra.mrb[0].mxu0 %v1370
    %v1416 = vpop.f32.mrb[0].mxu0
    %v1417 = vadd.f32 0.0, %v1416
    %v1418 = vpop.f32.mrb[0].mxu0
    %v1419 = vadd.f32 0.0, %v1418
    %v1420 = vpop.f32.mrb[0].mxu0
    %v1421 = vadd.f32 0.0, %v1420
    %v1422 = vpop.f32.mrb[0].mxu0
    %v1423 = vadd.f32 0.0, %v1422
    %1424 = vdwg.mxu0
    %v1425 = vadd.f32 %v969, %v1407
    %v1426 = vadd.f32 %v971, %v1409
    %v1427 = vadd.f32 %v973, %v1411
    %v1428 = vadd.f32 %v975, %v1413
    %v1429 = vadd.f32 %v979, %v1417
    %v1430 = vadd.f32 %v981, %v1419
    %v1431 = vadd.f32 %v983, %v1421
    %v1432 = vadd.f32 %v985, %v1423
    %v1433 = vld [vmem:[%s11] sm:$0x3]
    %v1434 = vpack.c.bf16 %v1427, %v1425
    %v1435 = vpack.c.bf16 %v1428, %v1426
    %v1436 = vpack.c.bf16 %v1431, %v1429
    %v1437 = vpack.c.bf16 %v1432, %v1430
    %v1439 = vsel %vm132, %v1433, 0
    %1441 = vmatprep.subr.bf16.mxu0 %v1435
    %1442 = vmatpush1.bf16.msra.mxu0 %v1434
    %1443 = vmatprep.subr.bf16.mxu0 %v1437
    %1444 = vmatpush1.bf16.msra.mxu0 %v1436
    %1445 = vmatprep.subr.bf16.mxu0 0
    %1446 = vmatpush1.bf16.msra.mxu0 0
    %1447 = vmatprep.subr.bf16.mxu0 0
    %1448 = vmatpush1.bf16.msra.mxu0 0
    %1449 = vmatprep.subr.bf16.mxu0 0
    %1450 = vmatpush1.bf16.msra.mxu0 0
    %1451 = vmatprep.subr.bf16.mxu0 0
    %1452 = vmatpush1.bf16.msra.mxu0 0
    %1453 = vmatprep.subr.bf16.mxu0 0
    %1454 = vmatpush1.bf16.msra.mxu0 0
    %1455 = vmatprep.subr.bf16.mxu0 0
    %1456 = vmatpush1.bf16.msra.mxu0 0
    %1457 = vmatprep.subr.bf16.mxu0 0
    %1458 = vmatpush1.bf16.msra.mxu0 0
    %1459 = vmatprep.subr.bf16.mxu0 0
    %1460 = vmatpush1.bf16.msra.mxu0 0
    %1461 = vmatprep.subr.bf16.mxu0 0
    %1462 = vmatpush1.bf16.msra.mxu0 0
    %1463 = vmatprep.subr.bf16.mxu0 0
    %1464 = vmatpush1.bf16.msra.mxu0 0
    %1465 = vmatprep.subr.bf16.mxu0 0
    %1466 = vmatpush1.bf16.msra.mxu0 0
    %1467 = vmatprep.subr.bf16.mxu0 0
    %1468 = vmatpush1.bf16.msra.mxu0 0
    %1469 = vmatprep.subr.bf16.mxu0 0
    %1470 = vmatpush1.bf16.msra.mxu0 0
    %1471 = vmatprep.subr.bf16.mxu0 0
    %1472 = vmatpush1.bf16.msra.mxu0 0
    %1473 = vmatprep.mubr.bf16.mxu0 0
    %1474 = vmatmul.mubr.bf16.gmra.mrb[0].mxu0 %v1439
    %v1475 = vpop.f32.mrb[0].mxu0
    %v1476 = vadd.f32 %v802, %v1475
    %v1477 = vpop.f32.mrb[0].mxu0
    %v1478 = vadd.f32 %v804, %v1477
    %v1479 = vpop.f32.mrb[0].mxu0
    %v1480 = vpop.f32.mrb[0].mxu0
    %1481 = vdwg.mxu0
    %v1484 = vcombine.low %v1476, %v1478
    %s1486 = scalar_lea.vmem [#allocation7], 8
    %1487 = vst [vmem:[%s1486] sm:$0xff] %v1484
    // Predicated region
    $region62: #{tpu_custom_call.1} parent=1 // pred_check
      _
    $region63: #{tpu_custom_call.1} parent=1 // pred_check_branch
      %1489 = sbr.rel (0) target = $region65
    $region64: #{tpu_custom_call.1} parent=1 // pred_region
      %s1491 = ssub.s32 256, 256
      %1492 = vsyncadd [#allocation4], %s1491
      %s1493 = sshll.u32 [#allocation7], 4
      %s1494 = int_to_ptr.vmem [resolvable:$true] %s1493
      %1499 = dma.vmem_to_hbm [thread:$0]  %s1494, 256, %s13, [#allocation4], 128, 128, 8
    $region65: #{tpu_custom_call.1} parent=1 // pred_fallthru
      _
    // Predicated region
    $region66: #{tpu_custom_call.1} parent=1 // pred_check
      _
    $region67: #{tpu_custom_call.1} parent=1 // pred_check_branch
      %1501 = sbr.rel (0) target = $region69
    $region68: #{tpu_custom_call.1} parent=1 // pred_region
      %1502 = dma.done [#allocation4], 256
    $region69: #{tpu_custom_call.1} parent=1 // pred_fallthru
      _
    %1503 = vsyncpa [#allocation3], 1
    %1504 = vsyncpa [#allocation6], 1
    %1505 = vsyncpa [#allocation4], 1

</llo_original>
